<compile_context>
chip_gen: v6e
topology: v6e:2x2x1
jax: 0.10.0
libtpu: 0.0.40
codegen_flags: <defaults>
</compile_context>

<pallas_src>
import jax
import jax.numpy as jnp
from jax.experimental import pallas as pl
from jax.experimental.pallas import tpu as pltpu

# Small shapes consistent with the module (original: D=512, n_kernel=200, hidden=512).
N, S, D = 16, 5, 128          # batch, #images (>= max(Ks)=5), feature dim
BN = N                        # batch tile per grid step: whole batch (grid=(1,))
N_KERNEL = 128                # conv output channels per kernel size (lane-dense)
KS = (2, 3, 5)
CAT = len(KS) * N_KERNEL      # concat width after the three convs
HIDDEN = 128                  # hidden_dim of orderImageNet

# Offsets into the packed f32 vector [b2|b3|b5|bf1|bf2|b0|w1_row|b1] (all 128-aligned).
OF_B2 = 0
OF_B3 = OF_B2 + N_KERNEL
OF_B5 = OF_B3 + N_KERNEL
OF_BF1 = OF_B5 + N_KERNEL
OF_BF2 = OF_BF1 + CAT
OF_B0 = OF_BF2 + D
OF_W1 = OF_B0 + HIDDEN
OF_B1 = OF_W1 + HIDDEN
VEC_LEN = OF_B1 + 1


def _order_kernel(feats_ref, wconv_ref, wf1_ref, wf2_ref,
                  w0a_ref, w0b_ref, vec_ref, score_ref):
    f32 = jnp.float32
    bf16 = jnp.bfloat16
    F, H = N_KERNEL, HIDDEN

    xb = feats_ref[...]                                   # (S, BN, D) bf16
    x2 = xb.reshape(S * BN, D)                            # layout no-op (BN % 8 == 0)

    # Packed biases / scorer row, sliced lane-aligned (multiples of 128).
    b2 = vec_ref[:, OF_B2:OF_B2 + F]
    b3 = vec_ref[:, OF_B3:OF_B3 + F]
    b5 = vec_ref[:, OF_B5:OF_B5 + F]
    bf1 = vec_ref[:, OF_BF1:OF_BF1 + CAT]
    bf2 = vec_ref[:, OF_BF2:OF_BF2 + D]
    b0 = vec_ref[:, OF_B0:OF_B0 + H]
    w1 = vec_ref[:, OF_W1:OF_W1 + H]                      # fc1 scorer row (1, H) f32
    b1 = vec_ref[:, OF_B1:OF_B1 + 1]                      # (1, 1)

    # --- CNN convs: ONE lane-dense matmul for all (K, k) weight slices ---------
    # y[s*BN+b, (off+k)*F + f] = feats[s, b, :] . W_{K,k}[:, f]
    y = jnp.dot(x2, wconv_ref[...], preferred_element_type=f32)   # (S*BN, 10F)
    y = y.reshape(S, BN, 10 * F)                                  # layout no-op

    def conv_pool(off, K, b):
        # Conv2d(1, F, (K, D)) + ReLU + max_pool1d over time; bias/ReLU hoisted:
        #   max_t relu(z_t + b) == relu(max_t z_t + b)   (b is time-invariant).
        T = S - K + 1
        z = y[0:T, :, off * F:(off + 1) * F]              # k = 0 term, all t
        for k in range(1, K):                             # K-1 tile-aligned shifted adds
            z = z + y[k:k + T, :, (off + k) * F:(off + k + 1) * F]
        zmax = z[0]
        for t in range(1, T):                             # max-pool over time (VPU max)
            zmax = jnp.maximum(zmax, z[t])
        return jnp.maximum(zmax + b, 0.0)                 # (BN, F)

    p2 = conv_pool(0, 2, b2)
    p3 = conv_pool(2, 3, b3)
    p5 = conv_pool(5, 5, b5)
    pcat = jnp.concatenate([p2, p3, p5], axis=-1)         # (BN, 3F), 128-aligned blocks

    # CNN.fc1 + ReLU (dropout(0.1) is identity at inference), then CNN.fc2.
    h = jnp.dot(pcat.astype(bf16), wf1_ref[...], preferred_element_type=f32)
    h = jnp.maximum(h + bf1, 0.0)                                           # (BN, CAT)
    ci = jnp.dot(h.astype(bf16), wf2_ref[...], preferred_element_type=f32) + bf2  # (BN, D)

    # --- orderImageNet head: cat((feats, CI), -1) -> fc0 -> relu -> fc1 --------
    # cat + fc0 split into feats @ W0[:D] + CI @ W0[D:]; CI term shared over S images.
    ci_h = jnp.dot(ci.astype(bf16), w0b_ref[...], preferred_element_type=f32)  # (BN, H)
    h0 = jnp.dot(x2, w0a_ref[...], preferred_element_type=f32).reshape(S, BN, H)
    h0 = jnp.maximum(h0 + ci_h[None, :, :] + b0, 0.0)     # (S, BN, H) f32

    # fc1 (H -> 1) as a lane-reduce: no width-1 matmul, no column concat.
    score_ref[...] = jnp.sum(h0 * w1, axis=-1) + b1       # (S, BN)


def order_image_net(feats, params):
    """feats: (N, S, D) f32.  Params are in math layout (see init_params).

    If porting real PyTorch weights: transpose Linear (out,in) -> (in,out) and
    Conv2d (F,1,K,D) -> (K,D,F) first.  At real sizes (n_kernel=200, CAT=600),
    zero-pad F 200->256 and CAT 600->640 (weights and biases) to stay lane-dense.
    """
    (w2, b2, w3, b3, w5, b5, wf1, bf1, wf2, bf2, w0, b0, w1, b1) = params
    bf16 = jnp.bfloat16

    # Single conv weight matrix: columns = [K2:k0,k1 | K3:k0..k2 | K5:k0..k4].
    wconv = jnp.concatenate(
        [w2[k] for k in range(2)] + [w3[k] for k in range(3)] + [w5[k] for k in range(5)],
        axis=1).astype(bf16)                               # (D, 10F)

    # All bias vectors + fc1-scorer row packed into one f32 lane vector.
    vec = jnp.concatenate([b2, b3, b5, bf1, bf2, b0, w1.T, b1], axis=1)  # (1, VEC_LEN)

    ins = [
        jnp.transpose(feats, (1, 0, 2)).astype(bf16),      # (S, N, D) bf16 (layout plumbing)
        wconv,
        wf1.astype(bf16),                                  # (CAT, CAT)
        wf2.astype(bf16),                                  # (CAT, D)
        w0[:D].astype(bf16), w0[D:].astype(bf16),          # fc0 split: feats / CI halves
        vec,
    ]

    def const_spec(a):
        # Grid-constant operand: DMA'd once; single-buffer (no 2x VMEM footprint).
        nd = a.ndim
        return pl.BlockSpec(a.shape, lambda i, _nd=nd: (0,) * _nd,
                            pipeline_mode=pl.Buffered(1))

    in_specs = [pl.BlockSpec((S, BN, D), lambda i: (0, i, 0))]   # feats: batch-tiled
    in_specs += [const_spec(a) for a in ins[1:]]                 # weights: grid-constant

    score_sn = pl.pallas_call(
        _order_kernel,
        out_shape=jax.ShapeDtypeStruct((S, N), jnp.float32),
        grid=(N // BN,),                                    # BN = N -> single grid step
        in_specs=in_specs,
        # NOTE: the (S, BN) out block relies on BN == N (block == full array dims).
        out_specs=pl.BlockSpec((S, BN), lambda i: (0, i)),
        compiler_params=pltpu.CompilerParams(
            # Weight-DMA bound: do not shard (= duplicate) the weight load across
            # v7x TensorCores at this size; flip to "parallel" + smaller BN only
            # when per-core compute exceeds the duplicated weight DMA.
            dimension_semantics=("arbitrary",),
            # At real sizes on v5e without Buffered(1) weights you would also need
            # vmem_limit_bytes≈32<<20; with single-buffered weights defaults fit.
        ),
    )(*ins)

    score = score_sn.T                                      # (N, S)

    # score2order: rank of each image under a descending sort.
    # TODO(synk): argsort has no Pallas TPU primitive; tiny glue kept in plain JAX
    # (tie-breaking of exactly-equal scores may differ from torch.sort(descending=True)).
    idx = jnp.argsort(-score, axis=-1)
    preds = jnp.argsort(idx, axis=-1)
    return score, preds.astype(jnp.int32)                   # (.long().cuda() equivalent)


def init_params(key):
    ks = jax.random.split(key, 14)
    F = N_KERNEL

    def w(k, shape, scale=0.02):
        return scale * jax.random.normal(k, shape, jnp.float32)

    return (
        w(ks[0], (2, D, F)),  w(ks[1], (1, F)),              # conv K=2 (W[k,d,f], bias)
        w(ks[2], (3, D, F)),  w(ks[3], (1, F)),              # conv K=3
        w(ks[4], (5, D, F)),  w(ks[5], (1, F)),              # conv K=5
        w(ks[6], (CAT, CAT)), w(ks[7], (1, CAT)),            # CNN.fc1
        w(ks[8], (CAT, D)),   w(ks[9], (1, D)),              # CNN.fc2
        w(ks[10], (2 * D, HIDDEN)), w(ks[11], (1, HIDDEN)),  # fc0
        w(ks[12], (HIDDEN, 1)),     w(ks[13], (1, 1)),       # fc1 (scorer)
    )


if __name__ == "__main__":
    key = jax.random.PRNGKey(0)
    kf, kp = jax.random.split(key)
    feats = jax.random.normal(kf, (N, S, D), jnp.float32)
    params = init_params(kp)

    score, preds = jax.jit(order_image_net)(feats, params)
    jax.block_until_ready((score, preds))
    assert score.shape == (N, S) and preds.shape == (N, S)
    print("KERNEL_OK")
</pallas_src>

<mosaic_0001>
module attributes {stable_mosaic.version = 11 : i64} {
  func.func @_order_kernel(%arg0: i32, %arg1: memref<5x16x128xbf16, #tpu.memory_space<vmem>>, %arg2: memref<128x1280xbf16, #tpu.memory_space<vmem>>, %arg3: memref<384x384xbf16, #tpu.memory_space<vmem>>, %arg4: memref<384x128xbf16, #tpu.memory_space<vmem>>, %arg5: memref<128x128xbf16, #tpu.memory_space<vmem>>, %arg6: memref<128x128xbf16, #tpu.memory_space<vmem>>, %arg7: memref<1x1153xf32, #tpu.memory_space<vmem>>, %arg8: memref<5x16xf32, #tpu.memory_space<vmem>>) attributes {dimension_semantics = [#tpu.dimension_semantics<arbitrary>], iteration_bounds = array<i64: 1>, scalar_prefetch = 0 : i64, scratch_operands = 0 : i64, tpu.core_type = #tpu.core_type<tc>, window_params = [{transform_indices = @transform_0, window_bounds = array<i64: 5, 16, 128>}, {pipeline_mode = #tpu.pipeline_mode<synchronous>, transform_indices = @transform_1, window_bounds = array<i64: 128, 1280>}, {pipeline_mode = #tpu.pipeline_mode<synchronous>, transform_indices = @transform_2, window_bounds = array<i64: 384, 384>}, {pipeline_mode = #tpu.pipeline_mode<synchronous>, transform_indices = @transform_3, window_bounds = array<i64: 384, 128>}, {pipeline_mode = #tpu.pipeline_mode<synchronous>, transform_indices = @transform_4, window_bounds = array<i64: 128, 128>}, {pipeline_mode = #tpu.pipeline_mode<synchronous>, transform_indices = @transform_5, window_bounds = array<i64: 128, 128>}, {pipeline_mode = #tpu.pipeline_mode<synchronous>, transform_indices = @transform_6, window_bounds = array<i64: 1, 1153>}, {transform_indices = @transform_7, window_bounds = array<i64: 5, 16>}]} {
    %c0 = arith.constant 0 : index
    %c0_0 = arith.constant 0 : index
    %c0_1 = arith.constant 0 : index
    %0 = vector.load %arg1[%c0, %c0_0, %c0_1] : memref<5x16x128xbf16, #tpu.memory_space<vmem>>, vector<5x16x128xbf16>
    %1 = vector.shape_cast %0 : vector<5x16x128xbf16> to vector<80x128xbf16>
    %c0_2 = arith.constant 0 : index
    %c0_3 = arith.constant 0 : index
    %2 = vector.load %arg7[%c0_2, %c0_3] : memref<1x1153xf32, #tpu.memory_space<vmem>>, vector<1x128xf32>
    %c0_4 = arith.constant 0 : index
    %c128 = arith.constant 128 : index
    %3 = vector.load %arg7[%c0_4, %c128] : memref<1x1153xf32, #tpu.memory_space<vmem>>, vector<1x128xf32>
    %c0_5 = arith.constant 0 : index
    %c256 = arith.constant 256 : index
    %4 = vector.load %arg7[%c0_5, %c256] : memref<1x1153xf32, #tpu.memory_space<vmem>>, vector<1x128xf32>
    %c0_6 = arith.constant 0 : index
    %c384 = arith.constant 384 : index
    %5 = vector.load %arg7[%c0_6, %c384] : memref<1x1153xf32, #tpu.memory_space<vmem>>, vector<1x384xf32>
    %c0_7 = arith.constant 0 : index
    %c768 = arith.constant 768 : index
    %6 = vector.load %arg7[%c0_7, %c768] : memref<1x1153xf32, #tpu.memory_space<vmem>>, vector<1x128xf32>
    %c0_8 = arith.constant 0 : index
    %c896 = arith.constant 896 : index
    %7 = vector.load %arg7[%c0_8, %c896] : memref<1x1153xf32, #tpu.memory_space<vmem>>, vector<1x128xf32>
    %c0_9 = arith.constant 0 : index
    %c1024 = arith.constant 1024 : index
    %8 = vector.load %arg7[%c0_9, %c1024] : memref<1x1153xf32, #tpu.memory_space<vmem>>, vector<1x128xf32>
    %c0_10 = arith.constant 0 : index
    %c1152 = arith.constant 1152 : index
    %9 = vector.load %arg7[%c0_10, %c1152] : memref<1x1153xf32, #tpu.memory_space<vmem>>, vector<1x1xf32>
    %c0_11 = arith.constant 0 : index
    %c0_12 = arith.constant 0 : index
    %10 = vector.load %arg2[%c0_11, %c0_12] : memref<128x1280xbf16, #tpu.memory_space<vmem>>, vector<128x1280xbf16>
    %cst = arith.constant dense<0.000000e+00> : vector<80x1280xf32>
    %11 = tpu.matmul %1, %10, %cst {dimension_numbers = #tpu.dot_dimension_numbers<[1], [0], [0], [1], [0, 0, 1, 1], [], []>} : vector<80x128xbf16>, vector<128x1280xbf16>, vector<80x1280xf32> -> vector<80x1280xf32>
    %12 = vector.shape_cast %11 : vector<80x1280xf32> to vector<5x16x1280xf32>
    %13 = vector.extract_strided_slice %12 {offsets = [0, 0, 0], sizes = [4, 16, 128], strides = [1, 1, 1]} : vector<5x16x1280xf32> to vector<4x16x128xf32>
    %14 = vector.extract_strided_slice %12 {offsets = [1, 0, 128], sizes = [4, 16, 128], strides = [1, 1, 1]} : vector<5x16x1280xf32> to vector<4x16x128xf32>
    %15 = arith.addf %13, %14 : vector<4x16x128xf32>
    %16 = vector.extract_strided_slice %15 {offsets = [0, 0, 0], sizes = [1, 16, 128], strides = [1, 1, 1]} : vector<4x16x128xf32> to vector<1x16x128xf32>
    %17 = vector.shape_cast %16 : vector<1x16x128xf32> to vector<16x128xf32>
    %18 = vector.extract_strided_slice %15 {offsets = [1, 0, 0], sizes = [1, 16, 128], strides = [1, 1, 1]} : vector<4x16x128xf32> to vector<1x16x128xf32>
    %19 = vector.shape_cast %18 : vector<1x16x128xf32> to vector<16x128xf32>
    %20 = arith.maximumf %17, %19 : vector<16x128xf32>
    %21 = vector.extract_strided_slice %15 {offsets = [2, 0, 0], sizes = [1, 16, 128], strides = [1, 1, 1]} : vector<4x16x128xf32> to vector<1x16x128xf32>
    %22 = vector.shape_cast %21 : vector<1x16x128xf32> to vector<16x128xf32>
    %23 = arith.maximumf %20, %22 : vector<16x128xf32>
    %24 = vector.extract_strided_slice %15 {offsets = [3, 0, 0], sizes = [1, 16, 128], strides = [1, 1, 1]} : vector<4x16x128xf32> to vector<1x16x128xf32>
    %25 = vector.shape_cast %24 : vector<1x16x128xf32> to vector<16x128xf32>
    %26 = arith.maximumf %23, %25 : vector<16x128xf32>
    %27 = vector.broadcast %2 : vector<1x128xf32> to vector<16x128xf32>
    %28 = arith.addf %26, %27 : vector<16x128xf32>
    %cst_13 = arith.constant 0.000000e+00 : f32
    %29 = vector.broadcast %cst_13 : f32 to vector<16x128xf32>
    %30 = arith.maximumf %28, %29 : vector<16x128xf32>
    %31 = vector.extract_strided_slice %12 {offsets = [0, 0, 256], sizes = [3, 16, 128], strides = [1, 1, 1]} : vector<5x16x1280xf32> to vector<3x16x128xf32>
    %32 = vector.extract_strided_slice %12 {offsets = [1, 0, 384], sizes = [3, 16, 128], strides = [1, 1, 1]} : vector<5x16x1280xf32> to vector<3x16x128xf32>
    %33 = arith.addf %31, %32 : vector<3x16x128xf32>
    %34 = vector.extract_strided_slice %12 {offsets = [2, 0, 512], sizes = [3, 16, 128], strides = [1, 1, 1]} : vector<5x16x1280xf32> to vector<3x16x128xf32>
    %35 = arith.addf %33, %34 : vector<3x16x128xf32>
    %36 = vector.extract_strided_slice %35 {offsets = [0, 0, 0], sizes = [1, 16, 128], strides = [1, 1, 1]} : vector<3x16x128xf32> to vector<1x16x128xf32>
    %37 = vector.shape_cast %36 : vector<1x16x128xf32> to vector<16x128xf32>
    %38 = vector.extract_strided_slice %35 {offsets = [1, 0, 0], sizes = [1, 16, 128], strides = [1, 1, 1]} : vector<3x16x128xf32> to vector<1x16x128xf32>
    %39 = vector.shape_cast %38 : vector<1x16x128xf32> to vector<16x128xf32>
    %40 = arith.maximumf %37, %39 : vector<16x128xf32>
    %41 = vector.extract_strided_slice %35 {offsets = [2, 0, 0], sizes = [1, 16, 128], strides = [1, 1, 1]} : vector<3x16x128xf32> to vector<1x16x128xf32>
    %42 = vector.shape_cast %41 : vector<1x16x128xf32> to vector<16x128xf32>
    %43 = arith.maximumf %40, %42 : vector<16x128xf32>
    %44 = vector.broadcast %3 : vector<1x128xf32> to vector<16x128xf32>
    %45 = arith.addf %43, %44 : vector<16x128xf32>
    %cst_14 = arith.constant 0.000000e+00 : f32
    %46 = vector.broadcast %cst_14 : f32 to vector<16x128xf32>
    %47 = arith.maximumf %45, %46 : vector<16x128xf32>
    %48 = vector.extract_strided_slice %12 {offsets = [0, 0, 640], sizes = [1, 16, 128], strides = [1, 1, 1]} : vector<5x16x1280xf32> to vector<1x16x128xf32>
    %49 = vector.extract_strided_slice %12 {offsets = [1, 0, 768], sizes = [1, 16, 128], strides = [1, 1, 1]} : vector<5x16x1280xf32> to vector<1x16x128xf32>
    %50 = arith.addf %48, %49 : vector<1x16x128xf32>
    %51 = vector.extract_strided_slice %12 {offsets = [2, 0, 896], sizes = [1, 16, 128], strides = [1, 1, 1]} : vector<5x16x1280xf32> to vector<1x16x128xf32>
    %52 = arith.addf %50, %51 : vector<1x16x128xf32>
    %53 = vector.extract_strided_slice %12 {offsets = [3, 0, 1024], sizes = [1, 16, 128], strides = [1, 1, 1]} : vector<5x16x1280xf32> to vector<1x16x128xf32>
    %54 = arith.addf %52, %53 : vector<1x16x128xf32>
    %55 = vector.extract_strided_slice %12 {offsets = [4, 0, 1152], sizes = [1, 16, 128], strides = [1, 1, 1]} : vector<5x16x1280xf32> to vector<1x16x128xf32>
    %56 = arith.addf %54, %55 : vector<1x16x128xf32>
    %57 = vector.shape_cast %56 : vector<1x16x128xf32> to vector<16x128xf32>
    %58 = vector.broadcast %4 : vector<1x128xf32> to vector<16x128xf32>
    %59 = arith.addf %57, %58 : vector<16x128xf32>
    %cst_15 = arith.constant 0.000000e+00 : f32
    %60 = vector.broadcast %cst_15 : f32 to vector<16x128xf32>
    %61 = arith.maximumf %59, %60 : vector<16x128xf32>
    %62 = tpu.concatenate %30, %47, %61 in 1 : vector<16x128xf32>, vector<16x128xf32>, vector<16x128xf32> -> vector<16x384xf32>
    %63 = arith.truncf %62 : vector<16x384xf32> to vector<16x384xbf16>
    %c0_16 = arith.constant 0 : index
    %c0_17 = arith.constant 0 : index
    %64 = vector.load %arg3[%c0_16, %c0_17] : memref<384x384xbf16, #tpu.memory_space<vmem>>, vector<384x384xbf16>
    %cst_18 = arith.constant dense<0.000000e+00> : vector<16x384xf32>
    %65 = tpu.matmul %63, %64, %cst_18 {dimension_numbers = #tpu.dot_dimension_numbers<[1], [0], [0], [1], [0, 0, 1, 1], [], []>} : vector<16x384xbf16>, vector<384x384xbf16>, vector<16x384xf32> -> vector<16x384xf32>
    %66 = vector.broadcast %5 : vector<1x384xf32> to vector<16x384xf32>
    %67 = arith.addf %65, %66 : vector<16x384xf32>
    %cst_19 = arith.constant 0.000000e+00 : f32
    %68 = vector.broadcast %cst_19 : f32 to vector<16x384xf32>
    %69 = arith.maximumf %67, %68 : vector<16x384xf32>
    %70 = arith.truncf %69 : vector<16x384xf32> to vector<16x384xbf16>
    %c0_20 = arith.constant 0 : index
    %c0_21 = arith.constant 0 : index
    %71 = vector.load %arg4[%c0_20, %c0_21] : memref<384x128xbf16, #tpu.memory_space<vmem>>, vector<384x128xbf16>
    %cst_22 = arith.constant dense<0.000000e+00> : vector<16x128xf32>
    %72 = tpu.matmul %70, %71, %cst_22 {dimension_numbers = #tpu.dot_dimension_numbers<[1], [0], [0], [1], [0, 0, 1, 1], [], []>} : vector<16x384xbf16>, vector<384x128xbf16>, vector<16x128xf32> -> vector<16x128xf32>
    %73 = vector.broadcast %6 : vector<1x128xf32> to vector<16x128xf32>
    %74 = arith.addf %72, %73 : vector<16x128xf32>
    %75 = arith.truncf %74 : vector<16x128xf32> to vector<16x128xbf16>
    %c0_23 = arith.constant 0 : index
    %c0_24 = arith.constant 0 : index
    %76 = vector.load %arg6[%c0_23, %c0_24] : memref<128x128xbf16, #tpu.memory_space<vmem>>, vector<128x128xbf16>
    %cst_25 = arith.constant dense<0.000000e+00> : vector<16x128xf32>
    %77 = tpu.matmul %75, %76, %cst_25 {dimension_numbers = #tpu.dot_dimension_numbers<[1], [0], [0], [1], [0, 0, 1, 1], [], []>} : vector<16x128xbf16>, vector<128x128xbf16>, vector<16x128xf32> -> vector<16x128xf32>
    %c0_26 = arith.constant 0 : index
    %c0_27 = arith.constant 0 : index
    %78 = vector.load %arg5[%c0_26, %c0_27] : memref<128x128xbf16, #tpu.memory_space<vmem>>, vector<128x128xbf16>
    %cst_28 = arith.constant dense<0.000000e+00> : vector<80x128xf32>
    %79 = tpu.matmul %1, %78, %cst_28 {dimension_numbers = #tpu.dot_dimension_numbers<[1], [0], [0], [1], [0, 0, 1, 1], [], []>} : vector<80x128xbf16>, vector<128x128xbf16>, vector<80x128xf32> -> vector<80x128xf32>
    %80 = vector.shape_cast %79 : vector<80x128xf32> to vector<5x16x128xf32>
    %81 = vector.shape_cast %77 : vector<16x128xf32> to vector<1x16x128xf32>
    %82 = vector.broadcast %81 : vector<1x16x128xf32> to vector<5x16x128xf32>
    %83 = arith.addf %80, %82 : vector<5x16x128xf32>
    %84 = vector.shape_cast %7 : vector<1x128xf32> to vector<1x1x128xf32>
    %85 = vector.broadcast %84 : vector<1x1x128xf32> to vector<5x16x128xf32>
    %86 = arith.addf %83, %85 : vector<5x16x128xf32>
    %cst_29 = arith.constant 0.000000e+00 : f32
    %87 = vector.broadcast %cst_29 : f32 to vector<5x16x128xf32>
    %88 = arith.maximumf %86, %87 : vector<5x16x128xf32>
    %89 = vector.shape_cast %8 : vector<1x128xf32> to vector<1x1x128xf32>
    %90 = vector.broadcast %89 : vector<1x1x128xf32> to vector<5x16x128xf32>
    %91 = arith.mulf %88, %90 : vector<5x16x128xf32>
    %cst_30 = arith.constant dense<0.000000e+00> : vector<5x16xf32>
    %92 = vector.multi_reduction <add>, %91, %cst_30 [2] : vector<5x16x128xf32> to vector<5x16xf32>
    %93 = vector.broadcast %9 : vector<1x1xf32> to vector<5x16xf32>
    %94 = arith.addf %92, %93 : vector<5x16xf32>
    %c0_31 = arith.constant 0 : index
    %c0_32 = arith.constant 0 : index
    %95 = vector.load %arg8[%c0_31, %c0_32] : memref<5x16xf32, #tpu.memory_space<vmem>>, vector<5x16xf32>
    tpu.vector_store %arg8[%c0_31, %c0_32], %94 {strides = array<i32>} : memref<5x16xf32, #tpu.memory_space<vmem>>, vector<5x16xf32>,
    return
  }
  func.func @transform_0(%arg0: i32) -> (i32, i32, i32) {
    %c0_i32 = arith.constant 0 : i32
    %c0_i32_0 = arith.constant 0 : i32
    %c0_i32_1 = arith.constant 0 : i32
    return %c0_i32, %arg0, %c0_i32_0 : i32, i32, i32
  }
  func.func @transform_1(%arg0: i32) -> (i32, i32) {
    %c0_i32 = arith.constant 0 : i32
    %c0_i32_0 = arith.constant 0 : i32
    %c0_i32_1 = arith.constant 0 : i32
    return %c0_i32, %c0_i32_0 : i32, i32
  }
  func.func @transform_2(%arg0: i32) -> (i32, i32) {
    %c0_i32 = arith.constant 0 : i32
    %c0_i32_0 = arith.constant 0 : i32
    %c0_i32_1 = arith.constant 0 : i32
    return %c0_i32, %c0_i32_0 : i32, i32
  }
  func.func @transform_3(%arg0: i32) -> (i32, i32) {
    %c0_i32 = arith.constant 0 : i32
    %c0_i32_0 = arith.constant 0 : i32
    %c0_i32_1 = arith.constant 0 : i32
    return %c0_i32, %c0_i32_0 : i32, i32
  }
  func.func @transform_4(%arg0: i32) -> (i32, i32) {
    %c0_i32 = arith.constant 0 : i32
    %c0_i32_0 = arith.constant 0 : i32
    %c0_i32_1 = arith.constant 0 : i32
    return %c0_i32, %c0_i32_0 : i32, i32
  }
  func.func @transform_5(%arg0: i32) -> (i32, i32) {
    %c0_i32 = arith.constant 0 : i32
    %c0_i32_0 = arith.constant 0 : i32
    %c0_i32_1 = arith.constant 0 : i32
    return %c0_i32, %c0_i32_0 : i32, i32
  }
  func.func @transform_6(%arg0: i32) -> (i32, i32) {
    %c0_i32 = arith.constant 0 : i32
    %c0_i32_0 = arith.constant 0 : i32
    %c0_i32_1 = arith.constant 0 : i32
    return %c0_i32, %c0_i32_0 : i32, i32
  }
  func.func @transform_7(%arg0: i32) -> (i32, i32) {
    %c0_i32 = arith.constant 0 : i32
    %c0_i32_0 = arith.constant 0 : i32
    return %c0_i32, %arg0 : i32, i32
  }
}

</mosaic_0001>

<llo_original>
// kernel: order_image_net.1
$region0: #{order_image_net.1}
  #allocation0 [shape = 'u32[]', space=smem, size = 0x4, offset = 0x4, fixed_abs, tag = 'smem constant byte address 0x4 - core index']
  #allocation1 [shape = 'u32[144,128]{1,0:T(1,128)}', space=vmem, size = 0x12000, scoped, tag = 'internal scratch']
  %s0 = inlined_call_operand.vmem [shape: bf16[5,16,128], index: 0, kind: input, shape index: {}]
  %s1 = inlined_call_operand.vmem [shape: bf16[128,1280], index: 1, kind: input, shape index: {}]
  %s2 = inlined_call_operand.vmem [shape: bf16[384,384], index: 2, kind: input, shape index: {}]
  %s3 = inlined_call_operand.vmem [shape: bf16[384,128], index: 3, kind: input, shape index: {}]
  %s4 = inlined_call_operand.vmem [shape: bf16[128,128], index: 4, kind: input, shape index: {}]
  %s5 = inlined_call_operand.vmem [shape: bf16[128,128], index: 5, kind: input, shape index: {}]
  %s6 = inlined_call_operand.vmem [shape: f32[1,1153], index: 6, kind: input, shape index: {}]
  %s7 = inlined_call_operand.vmem [shape: f32[5,16], index: 7, kind: output, shape index: {}]
  %s8 = sld [smem:[#allocation0]]
  $region38: #{order_image_net.1} parent=0
    _
  %s10 = ssub.s32 1, %s8
  %s11 = scalar_select 0, %s10, %s8
  // Predicated region
  $region2: #{order_image_net.1} parent=0 // pred_check
    _
  $region3: #{order_image_net.1} parent=0 // pred_check_branch
    %13 = sbr.rel (0) target = $region5
  $region4: #{order_image_net.1} parent=0 // pred_region
    _
  $region5: #{order_image_net.1} parent=0 // pred_fallthru
    _
  // Predicated region
  $region6: #{order_image_net.1} parent=0 // pred_check
    _
  $region7: #{order_image_net.1} parent=0 // pred_check_branch
    %15 = sbr.rel (0) target = $region9
  $region8: #{order_image_net.1} parent=0 // pred_region
    _
  $region9: #{order_image_net.1} parent=0 // pred_fallthru
    _
  // Predicated region
  $region10: #{order_image_net.1} parent=0 // pred_check
    _
  $region11: #{order_image_net.1} parent=0 // pred_check_branch
    %17 = sbr.rel (0) target = $region13
  $region12: #{order_image_net.1} parent=0 // pred_region
    _
  $region13: #{order_image_net.1} parent=0 // pred_fallthru
    _
  // Predicated region
  $region14: #{order_image_net.1} parent=0 // pred_check
    _
  $region15: #{order_image_net.1} parent=0 // pred_check_branch
    %19 = sbr.rel (0) target = $region17
  $region16: #{order_image_net.1} parent=0 // pred_region
    _
  $region17: #{order_image_net.1} parent=0 // pred_fallthru
    _
  // Predicated region
  $region18: #{order_image_net.1} parent=0 // pred_check
    _
  $region19: #{order_image_net.1} parent=0 // pred_check_branch
    %21 = sbr.rel (0) target = $region21
  $region20: #{order_image_net.1} parent=0 // pred_region
    _
  $region21: #{order_image_net.1} parent=0 // pred_fallthru
    _
  // Predicated region
  $region22: #{order_image_net.1} parent=0 // pred_check
    _
  $region23: #{order_image_net.1} parent=0 // pred_check_branch
    %23 = sbr.rel (0) target = $region25
  $region24: #{order_image_net.1} parent=0 // pred_region
    _
  $region25: #{order_image_net.1} parent=0 // pred_fallthru
    _
  // Predicated region
  $region26: #{order_image_net.1} parent=0 // pred_check
    _
  $region27: #{order_image_net.1} parent=0 // pred_check_branch
    %25 = sbr.rel (0) target = $region29
  $region28: #{order_image_net.1} parent=0 // pred_region
    _
  $region29: #{order_image_net.1} parent=0 // pred_fallthru
    _
  %v27 = vld [vmem:[%s0] sm:$0xf]
  %v28 = vld [vmem:[%s0 + $0x4] sm:$0xf]
  %v29 = vld [vmem:[%s0 + $0x8] sm:$0xf]
  %v30 = vld [vmem:[%s0 + $0xc] sm:$0xf]
  %v31 = vld [vmem:[%s0 + $0x10] sm:$0xf]
  %v32 = vld [vmem:[%s0 + $0x14] sm:$0xf]
  %v33 = vld [vmem:[%s0 + $0x18] sm:$0xf]
  %v34 = vld [vmem:[%s0 + $0x1c] sm:$0xf]
  %v35 = vld [vmem:[%s0 + $0x20] sm:$0xf]
  %v36 = vld [vmem:[%s0 + $0x24] sm:$0xf]
  %v37 = vld [vmem:[%s6] sm:$0x1]
  %v38 = vld [vmem:[%s6 + $0x1] sm:$0x1]
  %v39 = vld [vmem:[%s6 + $0x2] sm:$0x1]
  %v40 = vld [vmem:[%s6 + $0x3] sm:$0x7]
  %v41 = vld [vmem:[%s6 + $0x6] sm:$0x1]
  %v42 = vld [vmem:[%s6 + $0x7] sm:$0x1]
  %v43 = vld [vmem:[%s6 + $0x8] sm:$0x1]
  %v44 = vld [vmem:[%s6 + $0x9] sm:$0x1]
  %v45 = vld [vmem:[%s1] sm:$0xff]
  %v46 = vld [vmem:[%s1 + $0x8] sm:$0xff]
  %v47 = vld [vmem:[%s1 + $0x10] sm:$0xff]
  %v48 = vld [vmem:[%s1 + $0x18] sm:$0xff]
  %v49 = vld [vmem:[%s1 + $0x20] sm:$0xff]
  %v50 = vld [vmem:[%s1 + $0x28] sm:$0xff]
  %v51 = vld [vmem:[%s1 + $0x30] sm:$0xff]
  %v52 = vld [vmem:[%s1 + $0x38] sm:$0xff]
  %v53 = vld [vmem:[%s1 + $0x40] sm:$0xff]
  %v54 = vld [vmem:[%s1 + $0x48] sm:$0xff]
  %v55 = vld [vmem:[%s1 + $0x50] sm:$0xff]
  %v56 = vld [vmem:[%s1 + $0x58] sm:$0xff]
  %v57 = vld [vmem:[%s1 + $0x60] sm:$0xff]
  %v58 = vld [vmem:[%s1 + $0x68] sm:$0xff]
  %v59 = vld [vmem:[%s1 + $0x70] sm:$0xff]
  %v60 = vld [vmem:[%s1 + $0x78] sm:$0xff]
  %v61 = vld [vmem:[%s1 + $0x80] sm:$0xff]
  %v62 = vld [vmem:[%s1 + $0x88] sm:$0xff]
  %v63 = vld [vmem:[%s1 + $0x90] sm:$0xff]
  %v64 = vld [vmem:[%s1 + $0x98] sm:$0xff]
  %v65 = vld [vmem:[%s1 + $0xa0] sm:$0xff]
  %v66 = vld [vmem:[%s1 + $0xa8] sm:$0xff]
  %v67 = vld [vmem:[%s1 + $0xb0] sm:$0xff]
  %v68 = vld [vmem:[%s1 + $0xb8] sm:$0xff]
  %v69 = vld [vmem:[%s1 + $0xc0] sm:$0xff]
  %v70 = vld [vmem:[%s1 + $0xc8] sm:$0xff]
  %v71 = vld [vmem:[%s1 + $0xd0] sm:$0xff]
  %v72 = vld [vmem:[%s1 + $0xd8] sm:$0xff]
  %v73 = vld [vmem:[%s1 + $0xe0] sm:$0xff]
  %v74 = vld [vmem:[%s1 + $0xe8] sm:$0xff]
  %v75 = vld [vmem:[%s1 + $0xf0] sm:$0xff]
  %v76 = vld [vmem:[%s1 + $0xf8] sm:$0xff]
  %v77 = vld [vmem:[%s1 + $0x100] sm:$0xff]
  %v78 = vld [vmem:[%s1 + $0x108] sm:$0xff]
  %v79 = vld [vmem:[%s1 + $0x110] sm:$0xff]
  %v80 = vld [vmem:[%s1 + $0x118] sm:$0xff]
  %v81 = vld [vmem:[%s1 + $0x120] sm:$0xff]
  %v82 = vld [vmem:[%s1 + $0x128] sm:$0xff]
  %v83 = vld [vmem:[%s1 + $0x130] sm:$0xff]
  %v84 = vld [vmem:[%s1 + $0x138] sm:$0xff]
  %v85 = vld [vmem:[%s1 + $0x140] sm:$0xff]
  %v86 = vld [vmem:[%s1 + $0x148] sm:$0xff]
  %v87 = vld [vmem:[%s1 + $0x150] sm:$0xff]
  %v88 = vld [vmem:[%s1 + $0x158] sm:$0xff]
  %v89 = vld [vmem:[%s1 + $0x160] sm:$0xff]
  %v90 = vld [vmem:[%s1 + $0x168] sm:$0xff]
  %v91 = vld [vmem:[%s1 + $0x170] sm:$0xff]
  %v92 = vld [vmem:[%s1 + $0x178] sm:$0xff]
  %v93 = vld [vmem:[%s1 + $0x180] sm:$0xff]
  %v94 = vld [vmem:[%s1 + $0x188] sm:$0xff]
  %v95 = vld [vmem:[%s1 + $0x190] sm:$0xff]
  %v96 = vld [vmem:[%s1 + $0x198] sm:$0xff]
  %v97 = vld [vmem:[%s1 + $0x1a0] sm:$0xff]
  %v98 = vld [vmem:[%s1 + $0x1a8] sm:$0xff]
  %v99 = vld [vmem:[%s1 + $0x1b0] sm:$0xff]
  %v100 = vld [vmem:[%s1 + $0x1b8] sm:$0xff]
  %v101 = vld [vmem:[%s1 + $0x1c0] sm:$0xff]
  %v102 = vld [vmem:[%s1 + $0x1c8] sm:$0xff]
  %v103 = vld [vmem:[%s1 + $0x1d0] sm:$0xff]
  %v104 = vld [vmem:[%s1 + $0x1d8] sm:$0xff]
  %v105 = vld [vmem:[%s1 + $0x1e0] sm:$0xff]
  %v106 = vld [vmem:[%s1 + $0x1e8] sm:$0xff]
  %v107 = vld [vmem:[%s1 + $0x1f0] sm:$0xff]
  %v108 = vld [vmem:[%s1 + $0x1f8] sm:$0xff]
  %v109 = vld [vmem:[%s1 + $0x200] sm:$0xff]
  %v110 = vld [vmem:[%s1 + $0x208] sm:$0xff]
  %v111 = vld [vmem:[%s1 + $0x210] sm:$0xff]
  %v112 = vld [vmem:[%s1 + $0x218] sm:$0xff]
  %v113 = vld [vmem:[%s1 + $0x220] sm:$0xff]
  %v114 = vld [vmem:[%s1 + $0x228] sm:$0xff]
  %v115 = vld [vmem:[%s1 + $0x230] sm:$0xff]
  %v116 = vld [vmem:[%s1 + $0x238] sm:$0xff]
  %v117 = vld [vmem:[%s1 + $0x240] sm:$0xff]
  %v118 = vld [vmem:[%s1 + $0x248] sm:$0xff]
  %v119 = vld [vmem:[%s1 + $0x250] sm:$0xff]
  %v120 = vld [vmem:[%s1 + $0x258] sm:$0xff]
  %v121 = vld [vmem:[%s1 + $0x260] sm:$0xff]
  %v122 = vld [vmem:[%s1 + $0x268] sm:$0xff]
  %v123 = vld [vmem:[%s1 + $0x270] sm:$0xff]
  %v124 = vld [vmem:[%s1 + $0x278] sm:$0xff]
  %v135 = vunpack.c.l.b16 %v27
  %v136 = vunpack.c.l.b16 %v28
  %v137 = vunpack.c.l.b16 %v29
  %v138 = vunpack.c.l.b16 %v30
  %v139 = vunpack.c.l.b16 %v31
  %v140 = vunpack.c.l.b16 %v32
  %v141 = vunpack.c.l.b16 %v33
  %v142 = vunpack.c.l.b16 %v34
  %v143 = vunpack.c.l.b16 %v35
  %v144 = vunpack.c.l.b16 %v36
  %v145 = vpack.c.b16 %v136, %v135
  %v146 = vpack.c.b16 %v138, %v137
  %v147 = vpack.c.b16 %v140, %v139
  %v148 = vpack.c.b16 %v142, %v141
  %v149 = vpack.c.b16 %v144, %v143
  %v235 = vunpack.c.l.b16 %v45
  %v236 = vunpack.c.h.b16 %v45
  %v237 = vunpack.c.l.b16 %v46
  %v238 = vunpack.c.h.b16 %v46
  %v239 = vunpack.c.l.b16 %v47
  %v240 = vunpack.c.h.b16 %v47
  %v241 = vunpack.c.l.b16 %v48
  %v242 = vunpack.c.h.b16 %v48
  %v243 = vunpack.c.l.b16 %v49
  %v244 = vunpack.c.h.b16 %v49
  %v245 = vunpack.c.l.b16 %v50
  %v246 = vunpack.c.h.b16 %v50
  %v247 = vunpack.c.l.b16 %v51
  %v248 = vunpack.c.h.b16 %v51
  %v249 = vunpack.c.l.b16 %v52
  %v250 = vunpack.c.h.b16 %v52
  %v251 = vunpack.c.l.b16 %v53
  %v252 = vunpack.c.h.b16 %v53
  %v253 = vunpack.c.l.b16 %v54
  %v254 = vunpack.c.h.b16 %v54
  %v255 = vunpack.c.l.b16 %v55
  %v256 = vunpack.c.h.b16 %v55
  %v257 = vunpack.c.l.b16 %v56
  %v258 = vunpack.c.h.b16 %v56
  %v259 = vunpack.c.l.b16 %v57
  %v260 = vunpack.c.h.b16 %v57
  %v261 = vunpack.c.l.b16 %v58
  %v262 = vunpack.c.h.b16 %v58
  %v263 = vunpack.c.l.b16 %v59
  %v264 = vunpack.c.h.b16 %v59
  %v265 = vunpack.c.l.b16 %v60
  %v266 = vunpack.c.h.b16 %v60
  %v267 = vunpack.c.l.b16 %v61
  %v268 = vunpack.c.h.b16 %v61
  %v269 = vunpack.c.l.b16 %v62
  %v270 = vunpack.c.h.b16 %v62
  %v271 = vunpack.c.l.b16 %v63
  %v272 = vunpack.c.h.b16 %v63
  %v273 = vunpack.c.l.b16 %v64
  %v274 = vunpack.c.h.b16 %v64
  %v275 = vunpack.c.l.b16 %v65
  %v276 = vunpack.c.h.b16 %v65
  %v277 = vunpack.c.l.b16 %v66
  %v278 = vunpack.c.h.b16 %v66
  %v279 = vunpack.c.l.b16 %v67
  %v280 = vunpack.c.h.b16 %v67
  %v281 = vunpack.c.l.b16 %v68
  %v282 = vunpack.c.h.b16 %v68
  %v283 = vunpack.c.l.b16 %v69
  %v284 = vunpack.c.h.b16 %v69
  %v285 = vunpack.c.l.b16 %v70
  %v286 = vunpack.c.h.b16 %v70
  %v287 = vunpack.c.l.b16 %v71
  %v288 = vunpack.c.h.b16 %v71
  %v289 = vunpack.c.l.b16 %v72
  %v290 = vunpack.c.h.b16 %v72
  %v291 = vunpack.c.l.b16 %v73
  %v292 = vunpack.c.h.b16 %v73
  %v293 = vunpack.c.l.b16 %v74
  %v294 = vunpack.c.h.b16 %v74
  %v295 = vunpack.c.l.b16 %v75
  %v296 = vunpack.c.h.b16 %v75
  %v297 = vunpack.c.l.b16 %v76
  %v298 = vunpack.c.h.b16 %v76
  %v299 = vunpack.c.l.b16 %v77
  %v300 = vunpack.c.h.b16 %v77
  %v301 = vunpack.c.l.b16 %v78
  %v302 = vunpack.c.h.b16 %v78
  %v303 = vunpack.c.l.b16 %v79
  %v304 = vunpack.c.h.b16 %v79
  %v305 = vunpack.c.l.b16 %v80
  %v306 = vunpack.c.h.b16 %v80
  %v307 = vunpack.c.l.b16 %v81
  %v308 = vunpack.c.h.b16 %v81
  %v309 = vunpack.c.l.b16 %v82
  %v310 = vunpack.c.h.b16 %v82
  %v311 = vunpack.c.l.b16 %v83
  %v312 = vunpack.c.h.b16 %v83
  %v313 = vunpack.c.l.b16 %v84
  %v314 = vunpack.c.h.b16 %v84
  %v315 = vunpack.c.l.b16 %v85
  %v316 = vunpack.c.h.b16 %v85
  %v317 = vunpack.c.l.b16 %v86
  %v318 = vunpack.c.h.b16 %v86
  %v319 = vunpack.c.l.b16 %v87
  %v320 = vunpack.c.h.b16 %v87
  %v321 = vunpack.c.l.b16 %v88
  %v322 = vunpack.c.h.b16 %v88
  %v323 = vunpack.c.l.b16 %v89
  %v324 = vunpack.c.h.b16 %v89
  %v325 = vunpack.c.l.b16 %v90
  %v326 = vunpack.c.h.b16 %v90
  %v327 = vunpack.c.l.b16 %v91
  %v328 = vunpack.c.h.b16 %v91
  %v329 = vunpack.c.l.b16 %v92
  %v330 = vunpack.c.h.b16 %v92
  %v331 = vunpack.c.l.b16 %v93
  %v332 = vunpack.c.h.b16 %v93
  %v333 = vunpack.c.l.b16 %v94
  %v334 = vunpack.c.h.b16 %v94
  %v335 = vunpack.c.l.b16 %v95
  %v336 = vunpack.c.h.b16 %v95
  %v337 = vunpack.c.l.b16 %v96
  %v338 = vunpack.c.h.b16 %v96
  %v339 = vunpack.c.l.b16 %v97
  %v340 = vunpack.c.h.b16 %v97
  %v341 = vunpack.c.l.b16 %v98
  %v342 = vunpack.c.h.b16 %v98
  %v343 = vunpack.c.l.b16 %v99
  %v344 = vunpack.c.h.b16 %v99
  %v345 = vunpack.c.l.b16 %v100
  %v346 = vunpack.c.h.b16 %v100
  %v347 = vunpack.c.l.b16 %v101
  %v348 = vunpack.c.h.b16 %v101
  %v349 = vunpack.c.l.b16 %v102
  %v350 = vunpack.c.h.b16 %v102
  %v351 = vunpack.c.l.b16 %v103
  %v352 = vunpack.c.h.b16 %v103
  %v353 = vunpack.c.l.b16 %v104
  %v354 = vunpack.c.h.b16 %v104
  %v355 = vunpack.c.l.b16 %v105
  %v356 = vunpack.c.h.b16 %v105
  %v357 = vunpack.c.l.b16 %v106
  %v358 = vunpack.c.h.b16 %v106
  %v359 = vunpack.c.l.b16 %v107
  %v360 = vunpack.c.h.b16 %v107
  %v361 = vunpack.c.l.b16 %v108
  %v362 = vunpack.c.h.b16 %v108
  %v363 = vunpack.c.l.b16 %v109
  %v364 = vunpack.c.h.b16 %v109
  %v365 = vunpack.c.l.b16 %v110
  %v366 = vunpack.c.h.b16 %v110
  %v367 = vunpack.c.l.b16 %v111
  %v368 = vunpack.c.h.b16 %v111
  %v369 = vunpack.c.l.b16 %v112
  %v370 = vunpack.c.h.b16 %v112
  %v371 = vunpack.c.l.b16 %v113
  %v372 = vunpack.c.h.b16 %v113
  %v373 = vunpack.c.l.b16 %v114
  %v374 = vunpack.c.h.b16 %v114
  %v375 = vunpack.c.l.b16 %v115
  %v376 = vunpack.c.h.b16 %v115
  %v377 = vunpack.c.l.b16 %v116
  %v378 = vunpack.c.h.b16 %v116
  %v379 = vunpack.c.l.b16 %v117
  %v380 = vunpack.c.h.b16 %v117
  %v381 = vunpack.c.l.b16 %v118
  %v382 = vunpack.c.h.b16 %v118
  %v383 = vunpack.c.l.b16 %v119
  %v384 = vunpack.c.h.b16 %v119
  %v385 = vunpack.c.l.b16 %v120
  %v386 = vunpack.c.h.b16 %v120
  %v387 = vunpack.c.l.b16 %v121
  %v388 = vunpack.c.h.b16 %v121
  %v389 = vunpack.c.l.b16 %v122
  %v390 = vunpack.c.h.b16 %v122
  %v391 = vunpack.c.l.b16 %v123
  %v392 = vunpack.c.h.b16 %v123
  %v393 = vunpack.c.l.b16 %v124
  %v394 = vunpack.c.h.b16 %v124
  %v395 = vpack.c.b16 %v245, %v235
  %v396 = vpack.c.b16 %v246, %v236
  %v397 = vpack.c.b16 %v247, %v237
  %v398 = vpack.c.b16 %v248, %v238
  %v399 = vpack.c.b16 %v249, %v239
  %v400 = vpack.c.b16 %v250, %v240
  %v401 = vpack.c.b16 %v251, %v241
  %v402 = vpack.c.b16 %v252, %v242
  %v403 = vpack.c.b16 %v253, %v243
  %v404 = vpack.c.b16 %v254, %v244
  %v405 = vpack.c.b16 %v265, %v255
  %v406 = vpack.c.b16 %v266, %v256
  %v407 = vpack.c.b16 %v267, %v257
  %v408 = vpack.c.b16 %v268, %v258
  %v409 = vpack.c.b16 %v269, %v259
  %v410 = vpack.c.b16 %v270, %v260
  %v411 = vpack.c.b16 %v271, %v261
  %v412 = vpack.c.b16 %v272, %v262
  %v413 = vpack.c.b16 %v273, %v263
  %v414 = vpack.c.b16 %v274, %v264
  %v415 = vpack.c.b16 %v285, %v275
  %v416 = vpack.c.b16 %v286, %v276
  %v417 = vpack.c.b16 %v287, %v277
  %v418 = vpack.c.b16 %v288, %v278
  %v419 = vpack.c.b16 %v289, %v279
  %v420 = vpack.c.b16 %v290, %v280
  %v421 = vpack.c.b16 %v291, %v281
  %v422 = vpack.c.b16 %v292, %v282
  %v423 = vpack.c.b16 %v293, %v283
  %v424 = vpack.c.b16 %v294, %v284
  %v425 = vpack.c.b16 %v305, %v295
  %v426 = vpack.c.b16 %v306, %v296
  %v427 = vpack.c.b16 %v307, %v297
  %v428 = vpack.c.b16 %v308, %v298
  %v429 = vpack.c.b16 %v309, %v299
  %v430 = vpack.c.b16 %v310, %v300
  %v431 = vpack.c.b16 %v311, %v301
  %v432 = vpack.c.b16 %v312, %v302
  %v433 = vpack.c.b16 %v313, %v303
  %v434 = vpack.c.b16 %v314, %v304
  %v435 = vpack.c.b16 %v325, %v315
  %v436 = vpack.c.b16 %v326, %v316
  %v437 = vpack.c.b16 %v327, %v317
  %v438 = vpack.c.b16 %v328, %v318
  %v439 = vpack.c.b16 %v329, %v319
  %v440 = vpack.c.b16 %v330, %v320
  %v441 = vpack.c.b16 %v331, %v321
  %v442 = vpack.c.b16 %v332, %v322
  %v443 = vpack.c.b16 %v333, %v323
  %v444 = vpack.c.b16 %v334, %v324
  %v445 = vpack.c.b16 %v345, %v335
  %v446 = vpack.c.b16 %v346, %v336
  %v447 = vpack.c.b16 %v347, %v337
  %v448 = vpack.c.b16 %v348, %v338
  %v449 = vpack.c.b16 %v349, %v339
  %v450 = vpack.c.b16 %v350, %v340
  %v451 = vpack.c.b16 %v351, %v341
  %v452 = vpack.c.b16 %v352, %v342
  %v453 = vpack.c.b16 %v353, %v343
  %v454 = vpack.c.b16 %v354, %v344
  %v455 = vpack.c.b16 %v365, %v355
  %v456 = vpack.c.b16 %v366, %v356
  %v457 = vpack.c.b16 %v367, %v357
  %v458 = vpack.c.b16 %v368, %v358
  %v459 = vpack.c.b16 %v369, %v359
  %v460 = vpack.c.b16 %v370, %v360
  %v461 = vpack.c.b16 %v371, %v361
  %v462 = vpack.c.b16 %v372, %v362
  %v463 = vpack.c.b16 %v373, %v363
  %v464 = vpack.c.b16 %v374, %v364
  %v465 = vpack.c.b16 %v385, %v375
  %v466 = vpack.c.b16 %v386, %v376
  %v467 = vpack.c.b16 %v387, %v377
  %v468 = vpack.c.b16 %v388, %v378
  %v469 = vpack.c.b16 %v389, %v379
  %v470 = vpack.c.b16 %v390, %v380
  %v471 = vpack.c.b16 %v391, %v381
  %v472 = vpack.c.b16 %v392, %v382
  %v473 = vpack.c.b16 %v393, %v383
  %v474 = vpack.c.b16 %v394, %v384
  %555 = vmatprep.subr.bf16.mxu0 %v466
  %556 = vmatpush1.bf16.msra.mxu0 %v465
  %557 = vmatprep.subr.bf16.mxu0 %v456
  %558 = vmatpush1.bf16.msra.mxu0 %v455
  %559 = vmatprep.subr.bf16.mxu0 %v446
  %560 = vmatpush1.bf16.msra.mxu0 %v445
  %561 = vmatprep.subr.bf16.mxu0 %v436
  %562 = vmatpush1.bf16.msra.mxu0 %v435
  %563 = vmatprep.subr.bf16.mxu0 %v426
  %564 = vmatpush1.bf16.msra.mxu0 %v425
  %565 = vmatprep.subr.bf16.mxu0 %v416
  %566 = vmatpush1.bf16.msra.mxu0 %v415
  %567 = vmatprep.subr.bf16.mxu0 %v406
  %568 = vmatpush1.bf16.msra.mxu0 %v405
  %569 = vmatprep.subr.bf16.mxu0 %v396
  %570 = vmatpush1.bf16.msra.mxu0 %v395
  %571 = vmatprep.subr.bf16.mxu0 0
  %572 = vmatpush2.bf16.msra.mxu0 0
  %573 = vmatprep.subr.bf16.mxu0 0
  %574 = vmatpush2.bf16.msra.mxu0 0
  %575 = vmatprep.subr.bf16.mxu0 0
  %576 = vmatpush2.bf16.msra.mxu0 0
  %577 = vmatprep.subr.bf16.mxu0 0
  %578 = vmatpush2.bf16.msra.mxu0 0
  %579 = vmatprep.subr.bf16.mxu0 0
  %580 = vmatpush2.bf16.msra.mxu0 0
  %581 = vmatprep.subr.bf16.mxu0 0
  %582 = vmatpush2.bf16.msra.mxu0 0
  %583 = vmatprep.subr.bf16.mxu0 0
  %584 = vmatpush2.bf16.msra.mxu0 0
  %585 = vmatprep.subr.bf16.mxu0 0
  %586 = vmatpush2.bf16.msra.mxu0 0
  %587 = vmatprep.mubr.bf16.mxu0 0
  %588 = vmatmul.mubr.bf16.gmra.mxu0 %v145
  %v589 = vpop.f32.mrf.mxu0
  %v590 = vadd.f32 0.0, %v589
  %v591 = vpop.f32.mrf.mxu0
  %v592 = vpop.f32.mrf.mxu0
  %v593 = vadd.f32 0.0, %v592
  %v594 = vpop.f32.mrf.mxu0
  %595 = vmatprep.mubr.bf16.mxu0 0
  %596 = vmatmul.mubr.bf16.gmra.mxu0 %v146
  %v597 = vpop.f32.mrf.mxu0
  %v598 = vadd.f32 0.0, %v597
  %v599 = vpop.f32.mrf.mxu0
  %v600 = vadd.f32 0.0, %v599
  %v601 = vpop.f32.mrf.mxu0
  %v602 = vadd.f32 0.0, %v601
  %v603 = vpop.f32.mrf.mxu0
  %v604 = vadd.f32 0.0, %v603
  %605 = vmatprep.mubr.bf16.mxu0 0
  %606 = vmatmul.mubr.bf16.gmra.mxu0 %v147
  %v607 = vpop.f32.mrf.mxu0
  %v608 = vadd.f32 0.0, %v607
  %v609 = vpop.f32.mrf.mxu0
  %v610 = vadd.f32 0.0, %v609
  %v611 = vpop.f32.mrf.mxu0
  %v612 = vadd.f32 0.0, %v611
  %v613 = vpop.f32.mrf.mxu0
  %v614 = vadd.f32 0.0, %v613
  %615 = vmatprep.mubr.bf16.mxu0 0
  %616 = vmatmul.mubr.bf16.gmra.mxu0 %v148
  %v617 = vpop.f32.mrf.mxu0
  %v618 = vadd.f32 0.0, %v617
  %v619 = vpop.f32.mrf.mxu0
  %v620 = vadd.f32 0.0, %v619
  %v621 = vpop.f32.mrf.mxu0
  %v622 = vadd.f32 0.0, %v621
  %v623 = vpop.f32.mrf.mxu0
  %v624 = vadd.f32 0.0, %v623
  %625 = vmatprep.mubr.bf16.mxu0 0
  %626 = vmatmul.mubr.bf16.gmra.mxu0 %v149
  %v627 = vpop.f32.mrf.mxu0
  %v628 = vpop.f32.mrf.mxu0
  %v629 = vadd.f32 0.0, %v628
  %v630 = vpop.f32.mrf.mxu0
  %v631 = vpop.f32.mrf.mxu0
  %v632 = vadd.f32 0.0, %v631
  %633 = vdwg.mxu0
  %634 = vmatprep.subr.bf16.mxu0 %v468
  %635 = vmatpush1.bf16.msra.mxu0 %v467
  %636 = vmatprep.subr.bf16.mxu0 %v458
  %637 = vmatpush1.bf16.msra.mxu0 %v457
  %638 = vmatprep.subr.bf16.mxu0 %v448
  %639 = vmatpush1.bf16.msra.mxu0 %v447
  %640 = vmatprep.subr.bf16.mxu0 %v438
  %641 = vmatpush1.bf16.msra.mxu0 %v437
  %642 = vmatprep.subr.bf16.mxu0 %v428
  %643 = vmatpush1.bf16.msra.mxu0 %v427
  %644 = vmatprep.subr.bf16.mxu0 %v418
  %645 = vmatpush1.bf16.msra.mxu0 %v417
  %646 = vmatprep.subr.bf16.mxu0 %v408
  %647 = vmatpush1.bf16.msra.mxu0 %v407
  %648 = vmatprep.subr.bf16.mxu0 %v398
  %649 = vmatpush1.bf16.msra.mxu0 %v397
  %650 = vmatprep.subr.bf16.mxu0 0
  %651 = vmatpush2.bf16.msra.mxu0 0
  %652 = vmatprep.subr.bf16.mxu0 0
  %653 = vmatpush2.bf16.msra.mxu0 0
  %654 = vmatprep.subr.bf16.mxu0 0
  %655 = vmatpush2.bf16.msra.mxu0 0
  %656 = vmatprep.subr.bf16.mxu0 0
  %657 = vmatpush2.bf16.msra.mxu0 0
  %658 = vmatprep.subr.bf16.mxu0 0
  %659 = vmatpush2.bf16.msra.mxu0 0
  %660 = vmatprep.subr.bf16.mxu0 0
  %661 = vmatpush2.bf16.msra.mxu0 0
  %662 = vmatprep.subr.bf16.mxu0 0
  %663 = vmatpush2.bf16.msra.mxu0 0
  %664 = vmatprep.subr.bf16.mxu0 0
  %665 = vmatpush2.bf16.msra.mxu0 0
  %666 = vmatprep.mubr.bf16.mxu0 0
  %667 = vmatmul.mubr.bf16.gmra.mxu0 %v145
  %v668 = vpop.f32.mrf.mxu0
  %v669 = vadd.f32 0.0, %v668
  %v670 = vpop.f32.mrf.mxu0
  %v671 = vpop.f32.mrf.mxu0
  %v672 = vadd.f32 0.0, %v671
  %v673 = vpop.f32.mrf.mxu0
  %674 = vmatprep.mubr.bf16.mxu0 0
  %675 = vmatmul.mubr.bf16.gmra.mxu0 %v146
  %v676 = vpop.f32.mrf.mxu0
  %v677 = vadd.f32 0.0, %v676
  %v678 = vpop.f32.mrf.mxu0
  %v679 = vadd.f32 0.0, %v678
  %v680 = vpop.f32.mrf.mxu0
  %v681 = vadd.f32 0.0, %v680
  %v682 = vpop.f32.mrf.mxu0
  %v683 = vadd.f32 0.0, %v682
  %684 = vmatprep.mubr.bf16.mxu0 0
  %685 = vmatmul.mubr.bf16.gmra.mxu0 %v147
  %v686 = vpop.f32.mrf.mxu0
  %v687 = vadd.f32 0.0, %v686
  %v688 = vpop.f32.mrf.mxu0
  %v689 = vadd.f32 0.0, %v688
  %v690 = vpop.f32.mrf.mxu0
  %v691 = vadd.f32 0.0, %v690
  %v692 = vpop.f32.mrf.mxu0
  %v693 = vadd.f32 0.0, %v692
  %694 = vmatprep.mubr.bf16.mxu0 0
  %695 = vmatmul.mubr.bf16.gmra.mxu0 %v148
  %v696 = vpop.f32.mrf.mxu0
  %v697 = vpop.f32.mrf.mxu0
  %v698 = vadd.f32 0.0, %v697
  %v699 = vpop.f32.mrf.mxu0
  %v700 = vpop.f32.mrf.mxu0
  %v701 = vadd.f32 0.0, %v700
  %702 = vmatprep.mubr.bf16.mxu0 0
  %703 = vmatmul.mubr.bf16.gmra.mxu0 %v149
  %v704 = vpop.f32.mrf.mxu0
  %v705 = vpop.f32.mrf.mxu0
  %v706 = vpop.f32.mrf.mxu0
  %v707 = vpop.f32.mrf.mxu0
  %708 = vdwg.mxu0
  %709 = vmatprep.subr.bf16.mxu0 %v470
  %710 = vmatpush1.bf16.msra.mxu0 %v469
  %711 = vmatprep.subr.bf16.mxu0 %v460
  %712 = vmatpush1.bf16.msra.mxu0 %v459
  %713 = vmatprep.subr.bf16.mxu0 %v450
  %714 = vmatpush1.bf16.msra.mxu0 %v449
  %715 = vmatprep.subr.bf16.mxu0 %v440
  %716 = vmatpush1.bf16.msra.mxu0 %v439
  %717 = vmatprep.subr.bf16.mxu0 %v430
  %718 = vmatpush1.bf16.msra.mxu0 %v429
  %719 = vmatprep.subr.bf16.mxu0 %v420
  %720 = vmatpush1.bf16.msra.mxu0 %v419
  %721 = vmatprep.subr.bf16.mxu0 %v410
  %722 = vmatpush1.bf16.msra.mxu0 %v409
  %723 = vmatprep.subr.bf16.mxu0 %v400
  %724 = vmatpush1.bf16.msra.mxu0 %v399
  %725 = vmatprep.subr.bf16.mxu0 0
  %726 = vmatpush2.bf16.msra.mxu0 0
  %727 = vmatprep.subr.bf16.mxu0 0
  %728 = vmatpush2.bf16.msra.mxu0 0
  %729 = vmatprep.subr.bf16.mxu0 0
  %730 = vmatpush2.bf16.msra.mxu0 0
  %731 = vmatprep.subr.bf16.mxu0 0
  %732 = vmatpush2.bf16.msra.mxu0 0
  %733 = vmatprep.subr.bf16.mxu0 0
  %734 = vmatpush2.bf16.msra.mxu0 0
  %735 = vmatprep.subr.bf16.mxu0 0
  %736 = vmatpush2.bf16.msra.mxu0 0
  %737 = vmatprep.subr.bf16.mxu0 0
  %738 = vmatpush2.bf16.msra.mxu0 0
  %739 = vmatprep.subr.bf16.mxu0 0
  %740 = vmatpush2.bf16.msra.mxu0 0
  %741 = vmatprep.mubr.bf16.mxu0 0
  %742 = vmatmul.mubr.bf16.gmra.mxu0 %v145
  %v743 = vpop.f32.mrf.mxu0
  %v744 = vpop.f32.mrf.mxu0
  %v745 = vadd.f32 0.0, %v744
  %v746 = vpop.f32.mrf.mxu0
  %v747 = vpop.f32.mrf.mxu0
  %v748 = vadd.f32 0.0, %v747
  %749 = vmatprep.mubr.bf16.mxu0 0
  %750 = vmatmul.mubr.bf16.gmra.mxu0 %v146
  %v751 = vpop.f32.mrf.mxu0
  %v752 = vpop.f32.mrf.mxu0
  %v753 = vpop.f32.mrf.mxu0
  %v754 = vpop.f32.mrf.mxu0
  %755 = vmatprep.mubr.bf16.mxu0 0
  %756 = vmatmul.mubr.bf16.gmra.mxu0 %v147
  %v757 = vpop.f32.mrf.mxu0
  %v758 = vadd.f32 0.0, %v757
  %v759 = vpop.f32.mrf.mxu0
  %v760 = vpop.f32.mrf.mxu0
  %v761 = vadd.f32 0.0, %v760
  %v762 = vpop.f32.mrf.mxu0
  %763 = vmatprep.mubr.bf16.mxu0 0
  %764 = vmatmul.mubr.bf16.gmra.mxu0 %v148
  %v765 = vpop.f32.mrf.mxu0
  %v766 = vadd.f32 0.0, %v765
  %v767 = vpop.f32.mrf.mxu0
  %v768 = vpop.f32.mrf.mxu0
  %v769 = vadd.f32 0.0, %v768
  %v770 = vpop.f32.mrf.mxu0
  %771 = vmatprep.mubr.bf16.mxu0 0
  %772 = vmatmul.mubr.bf16.gmra.mxu0 %v149
  %v773 = vpop.f32.mrf.mxu0
  %v774 = vadd.f32 0.0, %v773
  %v775 = vpop.f32.mrf.mxu0
  %v776 = vpop.f32.mrf.mxu0
  %v777 = vadd.f32 0.0, %v776
  %v778 = vpop.f32.mrf.mxu0
  %779 = vdwg.mxu0
  %780 = vmatprep.subr.bf16.mxu0 %v472
  %781 = vmatpush1.bf16.msra.mxu0 %v471
  %782 = vmatprep.subr.bf16.mxu0 %v462
  %783 = vmatpush1.bf16.msra.mxu0 %v461
  %784 = vmatprep.subr.bf16.mxu0 %v452
  %785 = vmatpush1.bf16.msra.mxu0 %v451
  %786 = vmatprep.subr.bf16.mxu0 %v442
  %787 = vmatpush1.bf16.msra.mxu0 %v441
  %788 = vmatprep.subr.bf16.mxu0 %v432
  %789 = vmatpush1.bf16.msra.mxu0 %v431
  %790 = vmatprep.subr.bf16.mxu0 %v422
  %791 = vmatpush1.bf16.msra.mxu0 %v421
  %792 = vmatprep.subr.bf16.mxu0 %v412
  %793 = vmatpush1.bf16.msra.mxu0 %v411
  %794 = vmatprep.subr.bf16.mxu0 %v402
  %795 = vmatpush1.bf16.msra.mxu0 %v401
  %796 = vmatprep.subr.bf16.mxu0 0
  %797 = vmatpush2.bf16.msra.mxu0 0
  %798 = vmatprep.subr.bf16.mxu0 0
  %799 = vmatpush2.bf16.msra.mxu0 0
  %800 = vmatprep.subr.bf16.mxu0 0
  %801 = vmatpush2.bf16.msra.mxu0 0
  %802 = vmatprep.subr.bf16.mxu0 0
  %803 = vmatpush2.bf16.msra.mxu0 0
  %804 = vmatprep.subr.bf16.mxu0 0
  %805 = vmatpush2.bf16.msra.mxu0 0
  %806 = vmatprep.subr.bf16.mxu0 0
  %807 = vmatpush2.bf16.msra.mxu0 0
  %808 = vmatprep.subr.bf16.mxu0 0
  %809 = vmatpush2.bf16.msra.mxu0 0
  %810 = vmatprep.subr.bf16.mxu0 0
  %811 = vmatpush2.bf16.msra.mxu0 0
  %812 = vmatprep.mubr.bf16.mxu0 0
  %813 = vmatmul.mubr.bf16.gmra.mxu0 %v145
  %v814 = vpop.f32.mrf.mxu0
  %v815 = vpop.f32.mrf.mxu0
  %v816 = vpop.f32.mrf.mxu0
  %v817 = vpop.f32.mrf.mxu0
  %818 = vmatprep.mubr.bf16.mxu0 0
  %819 = vmatmul.mubr.bf16.gmra.mxu0 %v146
  %v820 = vpop.f32.mrf.mxu0
  %v821 = vadd.f32 0.0, %v820
  %v822 = vpop.f32.mrf.mxu0
  %v823 = vpop.f32.mrf.mxu0
  %v824 = vadd.f32 0.0, %v823
  %v825 = vpop.f32.mrf.mxu0
  %826 = vmatprep.mubr.bf16.mxu0 0
  %827 = vmatmul.mubr.bf16.gmra.mxu0 %v147
  %v828 = vpop.f32.mrf.mxu0
  %v829 = vpop.f32.mrf.mxu0
  %v830 = vadd.f32 0.0, %v829
  %v831 = vpop.f32.mrf.mxu0
  %v832 = vpop.f32.mrf.mxu0
  %v833 = vadd.f32 0.0, %v832
  %834 = vmatprep.mubr.bf16.mxu0 0
  %835 = vmatmul.mubr.bf16.gmra.mxu0 %v148
  %v836 = vpop.f32.mrf.mxu0
  %v837 = vpop.f32.mrf.mxu0
  %v838 = vpop.f32.mrf.mxu0
  %v839 = vpop.f32.mrf.mxu0
  %840 = vmatprep.mubr.bf16.mxu0 0
  %841 = vmatmul.mubr.bf16.gmra.mxu0 %v149
  %v842 = vpop.f32.mrf.mxu0
  %v843 = vpop.f32.mrf.mxu0
  %v844 = vpop.f32.mrf.mxu0
  %v845 = vpop.f32.mrf.mxu0
  %846 = vdwg.mxu0
  %847 = vmatprep.subr.bf16.mxu0 %v474
  %848 = vmatpush1.bf16.msra.mxu0 %v473
  %849 = vmatprep.subr.bf16.mxu0 %v464
  %850 = vmatpush1.bf16.msra.mxu0 %v463
  %851 = vmatprep.subr.bf16.mxu0 %v454
  %852 = vmatpush1.bf16.msra.mxu0 %v453
  %853 = vmatprep.subr.bf16.mxu0 %v444
  %854 = vmatpush1.bf16.msra.mxu0 %v443
  %855 = vmatprep.subr.bf16.mxu0 %v434
  %856 = vmatpush1.bf16.msra.mxu0 %v433
  %857 = vmatprep.subr.bf16.mxu0 %v424
  %858 = vmatpush1.bf16.msra.mxu0 %v423
  %859 = vmatprep.subr.bf16.mxu0 %v414
  %860 = vmatpush1.bf16.msra.mxu0 %v413
  %861 = vmatprep.subr.bf16.mxu0 %v404
  %862 = vmatpush1.bf16.msra.mxu0 %v403
  %863 = vmatprep.subr.bf16.mxu0 0
  %864 = vmatpush2.bf16.msra.mxu0 0
  %865 = vmatprep.subr.bf16.mxu0 0
  %866 = vmatpush2.bf16.msra.mxu0 0
  %867 = vmatprep.subr.bf16.mxu0 0
  %868 = vmatpush2.bf16.msra.mxu0 0
  %869 = vmatprep.subr.bf16.mxu0 0
  %870 = vmatpush2.bf16.msra.mxu0 0
  %871 = vmatprep.subr.bf16.mxu0 0
  %872 = vmatpush2.bf16.msra.mxu0 0
  %873 = vmatprep.subr.bf16.mxu0 0
  %874 = vmatpush2.bf16.msra.mxu0 0
  %875 = vmatprep.subr.bf16.mxu0 0
  %876 = vmatpush2.bf16.msra.mxu0 0
  %877 = vmatprep.subr.bf16.mxu0 0
  %878 = vmatpush2.bf16.msra.mxu0 0
  %879 = vmatprep.mubr.bf16.mxu0 0
  %880 = vmatmul.mubr.bf16.gmra.mxu0 %v145
  %v881 = vpop.f32.mrf.mxu0
  %v882 = vpop.f32.mrf.mxu0
  %v883 = vpop.f32.mrf.mxu0
  %v884 = vpop.f32.mrf.mxu0
  %885 = vmatprep.mubr.bf16.mxu0 0
  %886 = vmatmul.mubr.bf16.gmra.mxu0 %v146
  %v887 = vpop.f32.mrf.mxu0
  %v888 = vpop.f32.mrf.mxu0
  %v889 = vpop.f32.mrf.mxu0
  %v890 = vpop.f32.mrf.mxu0
  %891 = vmatprep.mubr.bf16.mxu0 0
  %892 = vmatmul.mubr.bf16.gmra.mxu0 %v147
  %v893 = vpop.f32.mrf.mxu0
  %v894 = vpop.f32.mrf.mxu0
  %v895 = vpop.f32.mrf.mxu0
  %v896 = vpop.f32.mrf.mxu0
  %897 = vmatprep.mubr.bf16.mxu0 0
  %898 = vmatmul.mubr.bf16.gmra.mxu0 %v148
  %v899 = vpop.f32.mrf.mxu0
  %v900 = vadd.f32 0.0, %v899
  %v901 = vpop.f32.mrf.mxu0
  %v902 = vpop.f32.mrf.mxu0
  %v903 = vadd.f32 0.0, %v902
  %v904 = vpop.f32.mrf.mxu0
  %905 = vmatprep.mubr.bf16.mxu0 0
  %906 = vmatmul.mubr.bf16.gmra.mxu0 %v149
  %v907 = vpop.f32.mrf.mxu0
  %v908 = vpop.f32.mrf.mxu0
  %v909 = vadd.f32 0.0, %v908
  %v910 = vpop.f32.mrf.mxu0
  %v911 = vpop.f32.mrf.mxu0
  %v912 = vadd.f32 0.0, %v911
  %913 = vdwg.mxu0
  %v914 = vadd.f32 %v590, %v600
  %v915 = vadd.f32 %v593, %v604
  %v916 = vadd.f32 %v598, %v610
  %v917 = vadd.f32 %v602, %v614
  %v918 = vadd.f32 %v608, %v620
  %v919 = vadd.f32 %v612, %v624
  %v920 = vadd.f32 %v618, %v629
  %v921 = vadd.f32 %v622, %v632
  %v922 = vmax.f32 %v914, %v916
  %v923 = vmax.f32 %v915, %v917
  %v924 = vmax.f32 %v922, %v918
  %v925 = vmax.f32 %v923, %v919
  %v926 = vmax.f32 %v924, %v920
  %v927 = vmax.f32 %v925, %v921
  %v929 = vlaneseq
  %v930 = vshrl.u32 %v929, 7
  %v931 = vsub.s32 0, %v930
  %v932 = vrot.slane %v37, %v931
  %v934 = vadd.f32 %v926, %v932
  %v935 = vadd.f32 %v927, %v932
  %v936 = vmax.f32 %v934, 0.0
  %v937 = vmax.f32 %v935, 0.0
  %v938 = vadd.f32 %v669, %v679
  %v939 = vadd.f32 %v672, %v683
  %v940 = vadd.f32 %v677, %v689
  %v941 = vadd.f32 %v681, %v693
  %v942 = vadd.f32 %v687, %v698
  %v943 = vadd.f32 %v691, %v701
  %v944 = vadd.f32 %v938, %v758
  %v945 = vadd.f32 %v939, %v761
  %v946 = vadd.f32 %v940, %v766
  %v947 = vadd.f32 %v941, %v769
  %v948 = vadd.f32 %v942, %v774
  %v949 = vadd.f32 %v943, %v777
  %v950 = vmax.f32 %v944, %v946
  %v951 = vmax.f32 %v945, %v947
  %v952 = vmax.f32 %v950, %v948
  %v953 = vmax.f32 %v951, %v949
  %v955 = vlaneseq
  %v956 = vshrl.u32 %v955, 7
  %v957 = vsub.s32 0, %v956
  %v958 = vrot.slane %v38, %v957
  %v960 = vadd.f32 %v952, %v958
  %v961 = vadd.f32 %v953, %v958
  %v962 = vmax.f32 %v960, 0.0
  %v963 = vmax.f32 %v961, 0.0
  %v964 = vadd.f32 %v745, %v821
  %v965 = vadd.f32 %v748, %v824
  %v966 = vadd.f32 %v964, %v830
  %v967 = vadd.f32 %v965, %v833
  %v968 = vadd.f32 %v966, %v900
  %v969 = vadd.f32 %v967, %v903
  %v970 = vadd.f32 %v968, %v909
  %v971 = vadd.f32 %v969, %v912
  %v973 = vlaneseq
  %v974 = vshrl.u32 %v973, 7
  %v975 = vsub.s32 0, %v974
  %v976 = vrot.slane %v39, %v975
  %v978 = vadd.f32 %v970, %v976
  %v979 = vadd.f32 %v971, %v976
  %v980 = vmax.f32 %v978, 0.0
  %v981 = vmax.f32 %v979, 0.0
  %v982 = vpack.c.bf16 %v937, %v936
  %v983 = vpack.c.bf16 %v963, %v962
  %v984 = vpack.c.bf16 %v981, %v980
  %v985 = vld [vmem:[%s2] sm:$0xff]
  %v986 = vld [vmem:[%s2 + $0x8] sm:$0xf]
  %v987 = vld [vmem:[%s2 + $0xc] sm:$0xff]
  %v988 = vld [vmem:[%s2 + $0x14] sm:$0xf]
  %v989 = vld [vmem:[%s2 + $0x18] sm:$0xff]
  %v990 = vld [vmem:[%s2 + $0x20] sm:$0xf]
  %v991 = vld [vmem:[%s2 + $0x24] sm:$0xff]
  %v992 = vld [vmem:[%s2 + $0x2c] sm:$0xf]
  %v993 = vld [vmem:[%s2 + $0x30] sm:$0xff]
  %v994 = vld [vmem:[%s2 + $0x38] sm:$0xf]
  %v995 = vld [vmem:[%s2 + $0x3c] sm:$0xff]
  %v996 = vld [vmem:[%s2 + $0x44] sm:$0xf]
  %v997 = vld [vmem:[%s2 + $0x48] sm:$0xff]
  %v998 = vld [vmem:[%s2 + $0x50] sm:$0xf]
  %v999 = vld [vmem:[%s2 + $0x54] sm:$0xff]
  %v1000 = vld [vmem:[%s2 + $0x5c] sm:$0xf]
  %v1001 = vld [vmem:[%s2 + $0x60] sm:$0xff]
  %v1002 = vld [vmem:[%s2 + $0x68] sm:$0xf]
  %v1003 = vld [vmem:[%s2 + $0x6c] sm:$0xff]
  %v1004 = vld [vmem:[%s2 + $0x74] sm:$0xf]
  %v1005 = vld [vmem:[%s2 + $0x78] sm:$0xff]
  %v1006 = vld [vmem:[%s2 + $0x80] sm:$0xf]
  %v1007 = vld [vmem:[%s2 + $0x84] sm:$0xff]
  %v1008 = vld [vmem:[%s2 + $0x8c] sm:$0xf]
  %v1009 = vld [vmem:[%s2 + $0x90] sm:$0xff]
  %v1010 = vld [vmem:[%s2 + $0x98] sm:$0xf]
  %v1011 = vld [vmem:[%s2 + $0x9c] sm:$0xff]
  %v1012 = vld [vmem:[%s2 + $0xa4] sm:$0xf]
  %v1013 = vld [vmem:[%s2 + $0xa8] sm:$0xff]
  %v1014 = vld [vmem:[%s2 + $0xb0] sm:$0xf]
  %v1015 = vld [vmem:[%s2 + $0xb4] sm:$0xff]
  %v1016 = vld [vmem:[%s2 + $0xbc] sm:$0xf]
  %v1017 = vld [vmem:[%s2 + $0xc0] sm:$0xff]
  %v1018 = vld [vmem:[%s2 + $0xc8] sm:$0xf]
  %v1019 = vld [vmem:[%s2 + $0xcc] sm:$0xff]
  %v1020 = vld [vmem:[%s2 + $0xd4] sm:$0xf]
  %v1021 = vld [vmem:[%s2 + $0xd8] sm:$0xff]
  %v1022 = vld [vmem:[%s2 + $0xe0] sm:$0xf]
  %v1023 = vld [vmem:[%s2 + $0xe4] sm:$0xff]
  %v1024 = vld [vmem:[%s2 + $0xec] sm:$0xf]
  %v1025 = vld [vmem:[%s2 + $0xf0] sm:$0xff]
  %v1026 = vld [vmem:[%s2 + $0xf8] sm:$0xf]
  %v1027 = vld [vmem:[%s2 + $0xfc] sm:$0xff]
  %v1028 = vld [vmem:[%s2 + $0x104] sm:$0xf]
  %v1029 = vld [vmem:[%s2 + $0x108] sm:$0xff]
  %v1030 = vld [vmem:[%s2 + $0x110] sm:$0xf]
  %v1031 = vld [vmem:[%s2 + $0x114] sm:$0xff]
  %v1032 = vld [vmem:[%s2 + $0x11c] sm:$0xf]
  %v1033 = vld [vmem:[%s2 + $0x120] sm:$0xff]
  %v1034 = vld [vmem:[%s2 + $0x128] sm:$0xf]
  %v1035 = vld [vmem:[%s2 + $0x12c] sm:$0xff]
  %v1036 = vld [vmem:[%s2 + $0x134] sm:$0xf]
  %v1037 = vld [vmem:[%s2 + $0x138] sm:$0xff]
  %v1038 = vld [vmem:[%s2 + $0x140] sm:$0xf]
  %v1039 = vld [vmem:[%s2 + $0x144] sm:$0xff]
  %v1040 = vld [vmem:[%s2 + $0x14c] sm:$0xf]
  %v1041 = vld [vmem:[%s2 + $0x150] sm:$0xff]
  %v1042 = vld [vmem:[%s2 + $0x158] sm:$0xf]
  %v1043 = vld [vmem:[%s2 + $0x15c] sm:$0xff]
  %v1044 = vld [vmem:[%s2 + $0x164] sm:$0xf]
  %v1045 = vld [vmem:[%s2 + $0x168] sm:$0xff]
  %v1046 = vld [vmem:[%s2 + $0x170] sm:$0xf]
  %v1047 = vld [vmem:[%s2 + $0x174] sm:$0xff]
  %v1048 = vld [vmem:[%s2 + $0x17c] sm:$0xf]
  %v1049 = vld [vmem:[%s2 + $0x180] sm:$0xff]
  %v1050 = vld [vmem:[%s2 + $0x188] sm:$0xf]
  %v1051 = vld [vmem:[%s2 + $0x18c] sm:$0xff]
  %v1052 = vld [vmem:[%s2 + $0x194] sm:$0xf]
  %v1053 = vld [vmem:[%s2 + $0x198] sm:$0xff]
  %v1054 = vld [vmem:[%s2 + $0x1a0] sm:$0xf]
  %v1055 = vld [vmem:[%s2 + $0x1a4] sm:$0xff]
  %v1056 = vld [vmem:[%s2 + $0x1ac] sm:$0xf]
  %v1057 = vld [vmem:[%s2 + $0x1b0] sm:$0xff]
  %v1058 = vld [vmem:[%s2 + $0x1b8] sm:$0xf]
  %v1059 = vld [vmem:[%s2 + $0x1bc] sm:$0xff]
  %v1060 = vld [vmem:[%s2 + $0x1c4] sm:$0xf]
  %v1061 = vld [vmem:[%s2 + $0x1c8] sm:$0xff]
  %v1062 = vld [vmem:[%s2 + $0x1d0] sm:$0xf]
  %v1063 = vld [vmem:[%s2 + $0x1d4] sm:$0xff]
  %v1064 = vld [vmem:[%s2 + $0x1dc] sm:$0xf]
  %v1065 = vld [vmem:[%s2 + $0x1e0] sm:$0xff]
  %v1066 = vld [vmem:[%s2 + $0x1e8] sm:$0xf]
  %v1067 = vld [vmem:[%s2 + $0x1ec] sm:$0xff]
  %v1068 = vld [vmem:[%s2 + $0x1f4] sm:$0xf]
  %v1069 = vld [vmem:[%s2 + $0x1f8] sm:$0xff]
  %v1070 = vld [vmem:[%s2 + $0x200] sm:$0xf]
  %v1071 = vld [vmem:[%s2 + $0x204] sm:$0xff]
  %v1072 = vld [vmem:[%s2 + $0x20c] sm:$0xf]
  %v1073 = vld [vmem:[%s2 + $0x210] sm:$0xff]
  %v1074 = vld [vmem:[%s2 + $0x218] sm:$0xf]
  %v1075 = vld [vmem:[%s2 + $0x21c] sm:$0xff]
  %v1076 = vld [vmem:[%s2 + $0x224] sm:$0xf]
  %v1077 = vld [vmem:[%s2 + $0x228] sm:$0xff]
  %v1078 = vld [vmem:[%s2 + $0x230] sm:$0xf]
  %v1079 = vld [vmem:[%s2 + $0x234] sm:$0xff]
  %v1080 = vld [vmem:[%s2 + $0x23c] sm:$0xf]
  %v1082 = vlaneseq
  %v1083 = vshrl.u32 %v1082, 7
  %v1084 = vsub.s32 0, %v1083
  %v1085 = vrot.slane %v40, %v1084
  %v1086 = vlaneseq
  %v1087 = vshrl.u32 %v1086, 7
  %v1088 = vsub.s32 1, %v1087
  %v1089 = vrot.slane %v40, %v1088
  %v1090 = vlaneseq
  %v1091 = vshrl.u32 %v1090, 7
  %v1092 = vsub.s32 2, %v1091
  %v1093 = vrot.slane %v40, %v1092
  %v1193 = vunpack.c.l.b16 %v985
  %v1194 = vunpack.c.h.b16 %v985
  %v1195 = vunpack.c.l.b16 %v986
  %v1196 = vunpack.c.l.b16 %v987
  %v1197 = vunpack.c.h.b16 %v987
  %v1198 = vunpack.c.l.b16 %v988
  %v1199 = vunpack.c.l.b16 %v989
  %v1200 = vunpack.c.h.b16 %v989
  %v1201 = vunpack.c.l.b16 %v990
  %v1202 = vunpack.c.l.b16 %v991
  %v1203 = vunpack.c.h.b16 %v991
  %v1204 = vunpack.c.l.b16 %v992
  %v1205 = vunpack.c.l.b16 %v993
  %v1206 = vunpack.c.h.b16 %v993
  %v1207 = vunpack.c.l.b16 %v994
  %v1208 = vunpack.c.l.b16 %v995
  %v1209 = vunpack.c.h.b16 %v995
  %v1210 = vunpack.c.l.b16 %v996
  %v1211 = vunpack.c.l.b16 %v997
  %v1212 = vunpack.c.h.b16 %v997
  %v1213 = vunpack.c.l.b16 %v998
  %v1214 = vunpack.c.l.b16 %v999
  %v1215 = vunpack.c.h.b16 %v999
  %v1216 = vunpack.c.l.b16 %v1000
  %v1217 = vunpack.c.l.b16 %v1001
  %v1218 = vunpack.c.h.b16 %v1001
  %v1219 = vunpack.c.l.b16 %v1002
  %v1220 = vunpack.c.l.b16 %v1003
  %v1221 = vunpack.c.h.b16 %v1003
  %v1222 = vunpack.c.l.b16 %v1004
  %v1223 = vunpack.c.l.b16 %v1005
  %v1224 = vunpack.c.h.b16 %v1005
  %v1225 = vunpack.c.l.b16 %v1006
  %v1226 = vunpack.c.l.b16 %v1007
  %v1227 = vunpack.c.h.b16 %v1007
  %v1228 = vunpack.c.l.b16 %v1008
  %v1229 = vunpack.c.l.b16 %v1009
  %v1230 = vunpack.c.h.b16 %v1009
  %v1231 = vunpack.c.l.b16 %v1010
  %v1232 = vunpack.c.l.b16 %v1011
  %v1233 = vunpack.c.h.b16 %v1011
  %v1234 = vunpack.c.l.b16 %v1012
  %v1235 = vunpack.c.l.b16 %v1013
  %v1236 = vunpack.c.h.b16 %v1013
  %v1237 = vunpack.c.l.b16 %v1014
  %v1238 = vunpack.c.l.b16 %v1015
  %v1239 = vunpack.c.h.b16 %v1015
  %v1240 = vunpack.c.l.b16 %v1016
  %v1241 = vunpack.c.l.b16 %v1017
  %v1242 = vunpack.c.h.b16 %v1017
  %v1243 = vunpack.c.l.b16 %v1018
  %v1244 = vunpack.c.l.b16 %v1019
  %v1245 = vunpack.c.h.b16 %v1019
  %v1246 = vunpack.c.l.b16 %v1020
  %v1247 = vunpack.c.l.b16 %v1021
  %v1248 = vunpack.c.h.b16 %v1021
  %v1249 = vunpack.c.l.b16 %v1022
  %v1250 = vunpack.c.l.b16 %v1023
  %v1251 = vunpack.c.h.b16 %v1023
  %v1252 = vunpack.c.l.b16 %v1024
  %v1253 = vunpack.c.l.b16 %v1025
  %v1254 = vunpack.c.h.b16 %v1025
  %v1255 = vunpack.c.l.b16 %v1026
  %v1256 = vunpack.c.l.b16 %v1027
  %v1257 = vunpack.c.h.b16 %v1027
  %v1258 = vunpack.c.l.b16 %v1028
  %v1259 = vunpack.c.l.b16 %v1029
  %v1260 = vunpack.c.h.b16 %v1029
  %v1261 = vunpack.c.l.b16 %v1030
  %v1262 = vunpack.c.l.b16 %v1031
  %v1263 = vunpack.c.h.b16 %v1031
  %v1264 = vunpack.c.l.b16 %v1032
  %v1265 = vunpack.c.l.b16 %v1033
  %v1266 = vunpack.c.h.b16 %v1033
  %v1267 = vunpack.c.l.b16 %v1034
  %v1268 = vunpack.c.l.b16 %v1035
  %v1269 = vunpack.c.h.b16 %v1035
  %v1270 = vunpack.c.l.b16 %v1036
  %v1271 = vunpack.c.l.b16 %v1037
  %v1272 = vunpack.c.h.b16 %v1037
  %v1273 = vunpack.c.l.b16 %v1038
  %v1274 = vunpack.c.l.b16 %v1039
  %v1275 = vunpack.c.h.b16 %v1039
  %v1276 = vunpack.c.l.b16 %v1040
  %v1277 = vunpack.c.l.b16 %v1041
  %v1278 = vunpack.c.h.b16 %v1041
  %v1279 = vunpack.c.l.b16 %v1042
  %v1280 = vunpack.c.l.b16 %v1043
  %v1281 = vunpack.c.h.b16 %v1043
  %v1282 = vunpack.c.l.b16 %v1044
  %v1283 = vunpack.c.l.b16 %v1045
  %v1284 = vunpack.c.h.b16 %v1045
  %v1285 = vunpack.c.l.b16 %v1046
  %v1286 = vunpack.c.l.b16 %v1047
  %v1287 = vunpack.c.h.b16 %v1047
  %v1288 = vunpack.c.l.b16 %v1048
  %v1289 = vunpack.c.l.b16 %v1049
  %v1290 = vunpack.c.h.b16 %v1049
  %v1291 = vunpack.c.l.b16 %v1050
  %v1292 = vunpack.c.l.b16 %v1051
  %v1293 = vunpack.c.h.b16 %v1051
  %v1294 = vunpack.c.l.b16 %v1052
  %v1295 = vunpack.c.l.b16 %v1053
  %v1296 = vunpack.c.h.b16 %v1053
  %v1297 = vunpack.c.l.b16 %v1054
  %v1298 = vunpack.c.l.b16 %v1055
  %v1299 = vunpack.c.h.b16 %v1055
  %v1300 = vunpack.c.l.b16 %v1056
  %v1301 = vunpack.c.l.b16 %v1057
  %v1302 = vunpack.c.h.b16 %v1057
  %v1303 = vunpack.c.l.b16 %v1058
  %v1304 = vunpack.c.l.b16 %v1059
  %v1305 = vunpack.c.h.b16 %v1059
  %v1306 = vunpack.c.l.b16 %v1060
  %v1307 = vunpack.c.l.b16 %v1061
  %v1308 = vunpack.c.h.b16 %v1061
  %v1309 = vunpack.c.l.b16 %v1062
  %v1310 = vunpack.c.l.b16 %v1063
  %v1311 = vunpack.c.h.b16 %v1063
  %v1312 = vunpack.c.l.b16 %v1064
  %v1313 = vunpack.c.l.b16 %v1065
  %v1314 = vunpack.c.h.b16 %v1065
  %v1315 = vunpack.c.l.b16 %v1066
  %v1316 = vunpack.c.l.b16 %v1067
  %v1317 = vunpack.c.h.b16 %v1067
  %v1318 = vunpack.c.l.b16 %v1068
  %v1319 = vunpack.c.l.b16 %v1069
  %v1320 = vunpack.c.h.b16 %v1069
  %v1321 = vunpack.c.l.b16 %v1070
  %v1322 = vunpack.c.l.b16 %v1071
  %v1323 = vunpack.c.h.b16 %v1071
  %v1324 = vunpack.c.l.b16 %v1072
  %v1325 = vunpack.c.l.b16 %v1073
  %v1326 = vunpack.c.h.b16 %v1073
  %v1327 = vunpack.c.l.b16 %v1074
  %v1328 = vunpack.c.l.b16 %v1075
  %v1329 = vunpack.c.h.b16 %v1075
  %v1330 = vunpack.c.l.b16 %v1076
  %v1331 = vunpack.c.l.b16 %v1077
  %v1332 = vunpack.c.h.b16 %v1077
  %v1333 = vunpack.c.l.b16 %v1078
  %v1334 = vunpack.c.l.b16 %v1079
  %v1335 = vunpack.c.h.b16 %v1079
  %v1336 = vunpack.c.l.b16 %v1080
  %v1337 = vpack.c.b16 %v1196, %v1193
  %v1338 = vpack.c.b16 %v1197, %v1194
  %v1339 = vpack.c.b16 %v1198, %v1195
  %v1340 = vpack.c.b16 %v1202, %v1199
  %v1341 = vpack.c.b16 %v1203, %v1200
  %v1342 = vpack.c.b16 %v1204, %v1201
  %v1343 = vpack.c.b16 %v1208, %v1205
  %v1344 = vpack.c.b16 %v1209, %v1206
  %v1345 = vpack.c.b16 %v1210, %v1207
  %v1346 = vpack.c.b16 %v1214, %v1211
  %v1347 = vpack.c.b16 %v1215, %v1212
  %v1348 = vpack.c.b16 %v1216, %v1213
  %v1349 = vpack.c.b16 %v1220, %v1217
  %v1350 = vpack.c.b16 %v1221, %v1218
  %v1351 = vpack.c.b16 %v1222, %v1219
  %v1352 = vpack.c.b16 %v1226, %v1223
  %v1353 = vpack.c.b16 %v1227, %v1224
  %v1354 = vpack.c.b16 %v1228, %v1225
  %v1355 = vpack.c.b16 %v1232, %v1229
  %v1356 = vpack.c.b16 %v1233, %v1230
  %v1357 = vpack.c.b16 %v1234, %v1231
  %v1358 = vpack.c.b16 %v1238, %v1235
  %v1359 = vpack.c.b16 %v1239, %v1236
  %v1360 = vpack.c.b16 %v1240, %v1237
  %v1361 = vpack.c.b16 %v1244, %v1241
  %v1362 = vpack.c.b16 %v1245, %v1242
  %v1363 = vpack.c.b16 %v1246, %v1243
  %v1364 = vpack.c.b16 %v1250, %v1247
  %v1365 = vpack.c.b16 %v1251, %v1248
  %v1366 = vpack.c.b16 %v1252, %v1249
  %v1367 = vpack.c.b16 %v1256, %v1253
  %v1368 = vpack.c.b16 %v1257, %v1254
  %v1369 = vpack.c.b16 %v1258, %v1255
  %v1370 = vpack.c.b16 %v1262, %v1259
  %v1371 = vpack.c.b16 %v1263, %v1260
  %v1372 = vpack.c.b16 %v1264, %v1261
  %v1373 = vpack.c.b16 %v1268, %v1265
  %v1374 = vpack.c.b16 %v1269, %v1266
  %v1375 = vpack.c.b16 %v1270, %v1267
  %v1376 = vpack.c.b16 %v1274, %v1271
  %v1377 = vpack.c.b16 %v1275, %v1272
  %v1378 = vpack.c.b16 %v1276, %v1273
  %v1379 = vpack.c.b16 %v1280, %v1277
  %v1380 = vpack.c.b16 %v1281, %v1278
  %v1381 = vpack.c.b16 %v1282, %v1279
  %v1382 = vpack.c.b16 %v1286, %v1283
  %v1383 = vpack.c.b16 %v1287, %v1284
  %v1384 = vpack.c.b16 %v1288, %v1285
  %v1385 = vpack.c.b16 %v1292, %v1289
  %v1386 = vpack.c.b16 %v1293, %v1290
  %v1387 = vpack.c.b16 %v1294, %v1291
  %v1388 = vpack.c.b16 %v1298, %v1295
  %v1389 = vpack.c.b16 %v1299, %v1296
  %v1390 = vpack.c.b16 %v1300, %v1297
  %v1391 = vpack.c.b16 %v1304, %v1301
  %v1392 = vpack.c.b16 %v1305, %v1302
  %v1393 = vpack.c.b16 %v1306, %v1303
  %v1394 = vpack.c.b16 %v1310, %v1307
  %v1395 = vpack.c.b16 %v1311, %v1308
  %v1396 = vpack.c.b16 %v1312, %v1309
  %v1397 = vpack.c.b16 %v1316, %v1313
  %v1398 = vpack.c.b16 %v1317, %v1314
  %v1399 = vpack.c.b16 %v1318, %v1315
  %v1400 = vpack.c.b16 %v1322, %v1319
  %v1401 = vpack.c.b16 %v1323, %v1320
  %v1402 = vpack.c.b16 %v1324, %v1321
  %v1403 = vpack.c.b16 %v1328, %v1325
  %v1404 = vpack.c.b16 %v1329, %v1326
  %v1405 = vpack.c.b16 %v1330, %v1327
  %v1406 = vpack.c.b16 %v1334, %v1331
  %v1407 = vpack.c.b16 %v1335, %v1332
  %v1408 = vpack.c.b16 %v1336, %v1333
  %1481 = vmatprep.subr.bf16.mxu0 %v1359
  %1482 = vmatpush1.bf16.msra.mxu0 %v1358
  %1483 = vmatprep.subr.bf16.mxu0 %v1356
  %1484 = vmatpush1.bf16.msra.mxu0 %v1355
  %1485 = vmatprep.subr.bf16.mxu0 %v1353
  %1486 = vmatpush1.bf16.msra.mxu0 %v1352
  %1487 = vmatprep.subr.bf16.mxu0 %v1350
  %1488 = vmatpush1.bf16.msra.mxu0 %v1349
  %1489 = vmatprep.subr.bf16.mxu0 %v1347
  %1490 = vmatpush1.bf16.msra.mxu0 %v1346
  %1491 = vmatprep.subr.bf16.mxu0 %v1344
  %1492 = vmatpush1.bf16.msra.mxu0 %v1343
  %1493 = vmatprep.subr.bf16.mxu0 %v1341
  %1494 = vmatpush1.bf16.msra.mxu0 %v1340
  %1495 = vmatprep.subr.bf16.mxu0 %v1338
  %1496 = vmatpush1.bf16.msra.mxu0 %v1337
  %1497 = vmatprep.subr.bf16.mxu0 %v1383
  %1498 = vmatpush2.bf16.msra.mxu0 %v1382
  %1499 = vmatprep.subr.bf16.mxu0 %v1380
  %1500 = vmatpush2.bf16.msra.mxu0 %v1379
  %1501 = vmatprep.subr.bf16.mxu0 %v1377
  %1502 = vmatpush2.bf16.msra.mxu0 %v1376
  %1503 = vmatprep.subr.bf16.mxu0 %v1374
  %1504 = vmatpush2.bf16.msra.mxu0 %v1373
  %1505 = vmatprep.subr.bf16.mxu0 %v1371
  %1506 = vmatpush2.bf16.msra.mxu0 %v1370
  %1507 = vmatprep.subr.bf16.mxu0 %v1368
  %1508 = vmatpush2.bf16.msra.mxu0 %v1367
  %1509 = vmatprep.subr.bf16.mxu0 %v1365
  %1510 = vmatpush2.bf16.msra.mxu0 %v1364
  %1511 = vmatprep.subr.bf16.mxu0 %v1362
  %1512 = vmatpush2.bf16.msra.mxu0 %v1361
  %1513 = vmatprep.mubr.bf16.mxu0 %v983
  %1514 = vmatmul.mubr.bf16.gmra.mxu0 %v982
  %v1515 = vpop.f32.mrf.mxu0
  %v1516 = vadd.f32 %v1085, %v1515
  %v1517 = vpop.f32.mrf.mxu0
  %v1518 = vadd.f32 %v1089, %v1517
  %v1519 = vpop.f32.mrf.mxu0
  %v1520 = vadd.f32 %v1085, %v1519
  %v1521 = vpop.f32.mrf.mxu0
  %v1522 = vadd.f32 %v1089, %v1521
  %1523 = vdwg.mxu0
  %1524 = vmatprep.subr.bf16.mxu0 %v1407
  %1525 = vmatpush1.bf16.msra.mxu0 %v1406
  %1526 = vmatprep.subr.bf16.mxu0 %v1404
  %1527 = vmatpush1.bf16.msra.mxu0 %v1403
  %1528 = vmatprep.subr.bf16.mxu0 %v1401
  %1529 = vmatpush1.bf16.msra.mxu0 %v1400
  %1530 = vmatprep.subr.bf16.mxu0 %v1398
  %1531 = vmatpush1.bf16.msra.mxu0 %v1397
  %1532 = vmatprep.subr.bf16.mxu0 %v1395
  %1533 = vmatpush1.bf16.msra.mxu0 %v1394
  %1534 = vmatprep.subr.bf16.mxu0 %v1392
  %1535 = vmatpush1.bf16.msra.mxu0 %v1391
  %1536 = vmatprep.subr.bf16.mxu0 %v1389
  %1537 = vmatpush1.bf16.msra.mxu0 %v1388
  %1538 = vmatprep.subr.bf16.mxu0 %v1386
  %1539 = vmatpush1.bf16.msra.mxu0 %v1385
  %1540 = vmatprep.subr.bf16.mxu0 0
  %1541 = vmatpush2.bf16.msra.mxu0 0
  %1542 = vmatprep.subr.bf16.mxu0 0
  %1543 = vmatpush2.bf16.msra.mxu0 0
  %1544 = vmatprep.subr.bf16.mxu0 0
  %1545 = vmatpush2.bf16.msra.mxu0 0
  %1546 = vmatprep.subr.bf16.mxu0 0
  %1547 = vmatpush2.bf16.msra.mxu0 0
  %1548 = vmatprep.subr.bf16.mxu0 0
  %1549 = vmatpush2.bf16.msra.mxu0 0
  %1550 = vmatprep.subr.bf16.mxu0 0
  %1551 = vmatpush2.bf16.msra.mxu0 0
  %1552 = vmatprep.subr.bf16.mxu0 0
  %1553 = vmatpush2.bf16.msra.mxu0 0
  %1554 = vmatprep.subr.bf16.mxu0 0
  %1555 = vmatpush2.bf16.msra.mxu0 0
  %1556 = vmatprep.mubr.bf16.mxu0 0
  %1557 = vmatmul.mubr.bf16.gmra.mxu0 %v984
  %v1558 = vpop.f32.mrf.mxu0
  %v1559 = vadd.f32 %v1516, %v1558
  %v1560 = vpop.f32.mrf.mxu0
  %v1561 = vadd.f32 %v1518, %v1560
  %v1562 = vpop.f32.mrf.mxu0
  %v1563 = vadd.f32 %v1520, %v1562
  %v1564 = vpop.f32.mrf.mxu0
  %v1565 = vadd.f32 %v1522, %v1564
  %1566 = vdwg.mxu0
  %1567 = vmatprep.subr.bf16.mxu0 0
  %1568 = vmatpush1.bf16.msra.mxu0 %v1360
  %1569 = vmatprep.subr.bf16.mxu0 0
  %1570 = vmatpush1.bf16.msra.mxu0 %v1357
  %1571 = vmatprep.subr.bf16.mxu0 0
  %1572 = vmatpush1.bf16.msra.mxu0 %v1354
  %1573 = vmatprep.subr.bf16.mxu0 0
  %1574 = vmatpush1.bf16.msra.mxu0 %v1351
  %1575 = vmatprep.subr.bf16.mxu0 0
  %1576 = vmatpush1.bf16.msra.mxu0 %v1348
  %1577 = vmatprep.subr.bf16.mxu0 0
  %1578 = vmatpush1.bf16.msra.mxu0 %v1345
  %1579 = vmatprep.subr.bf16.mxu0 0
  %1580 = vmatpush1.bf16.msra.mxu0 %v1342
  %1581 = vmatprep.subr.bf16.mxu0 0
  %1582 = vmatpush1.bf16.msra.mxu0 %v1339
  %1583 = vmatprep.subr.bf16.mxu0 0
  %1584 = vmatpush2.bf16.msra.mxu0 %v1384
  %1585 = vmatprep.subr.bf16.mxu0 0
  %1586 = vmatpush2.bf16.msra.mxu0 %v1381
  %1587 = vmatprep.subr.bf16.mxu0 0
  %1588 = vmatpush2.bf16.msra.mxu0 %v1378
  %1589 = vmatprep.subr.bf16.mxu0 0
  %1590 = vmatpush2.bf16.msra.mxu0 %v1375
  %1591 = vmatprep.subr.bf16.mxu0 0
  %1592 = vmatpush2.bf16.msra.mxu0 %v1372
  %1593 = vmatprep.subr.bf16.mxu0 0
  %1594 = vmatpush2.bf16.msra.mxu0 %v1369
  %1595 = vmatprep.subr.bf16.mxu0 0
  %1596 = vmatpush2.bf16.msra.mxu0 %v1366
  %1597 = vmatprep.subr.bf16.mxu0 0
  %1598 = vmatpush2.bf16.msra.mxu0 %v1363
  %1599 = vmatprep.mubr.bf16.mxu0 %v983
  %1600 = vmatmul.mubr.bf16.gmra.mxu0 %v982
  %v1601 = vpop.f32.mrf.mxu0
  %v1602 = vadd.f32 %v1093, %v1601
  %v1603 = vpop.f32.mrf.mxu0
  %v1604 = vpop.f32.mrf.mxu0
  %v1605 = vadd.f32 %v1093, %v1604
  %v1606 = vpop.f32.mrf.mxu0
  %1607 = vdwg.mxu0
  %1608 = vmatprep.subr.bf16.mxu0 0
  %1609 = vmatpush1.bf16.msra.mxu0 %v1408
  %1610 = vmatprep.subr.bf16.mxu0 0
  %1611 = vmatpush1.bf16.msra.mxu0 %v1405
  %1612 = vmatprep.subr.bf16.mxu0 0
  %1613 = vmatpush1.bf16.msra.mxu0 %v1402
  %1614 = vmatprep.subr.bf16.mxu0 0
  %1615 = vmatpush1.bf16.msra.mxu0 %v1399
  %1616 = vmatprep.subr.bf16.mxu0 0
  %1617 = vmatpush1.bf16.msra.mxu0 %v1396
  %1618 = vmatprep.subr.bf16.mxu0 0
  %1619 = vmatpush1.bf16.msra.mxu0 %v1393
  %1620 = vmatprep.subr.bf16.mxu0 0
  %1621 = vmatpush1.bf16.msra.mxu0 %v1390
  %1622 = vmatprep.subr.bf16.mxu0 0
  %1623 = vmatpush1.bf16.msra.mxu0 %v1387
  %1624 = vmatprep.subr.bf16.mxu0 0
  %1625 = vmatpush2.bf16.msra.mxu0 0
  %1626 = vmatprep.subr.bf16.mxu0 0
  %1627 = vmatpush2.bf16.msra.mxu0 0
  %1628 = vmatprep.subr.bf16.mxu0 0
  %1629 = vmatpush2.bf16.msra.mxu0 0
  %1630 = vmatprep.subr.bf16.mxu0 0
  %1631 = vmatpush2.bf16.msra.mxu0 0
  %1632 = vmatprep.subr.bf16.mxu0 0
  %1633 = vmatpush2.bf16.msra.mxu0 0
  %1634 = vmatprep.subr.bf16.mxu0 0
  %1635 = vmatpush2.bf16.msra.mxu0 0
  %1636 = vmatprep.subr.bf16.mxu0 0
  %1637 = vmatpush2.bf16.msra.mxu0 0
  %1638 = vmatprep.subr.bf16.mxu0 0
  %1639 = vmatpush2.bf16.msra.mxu0 0
  %1640 = vmatprep.mubr.bf16.mxu0 0
  %1641 = vmatmul.mubr.bf16.gmra.mxu0 %v984
  %v1642 = vpop.f32.mrf.mxu0
  %v1643 = vadd.f32 %v1602, %v1642
  %v1644 = vpop.f32.mrf.mxu0
  %v1645 = vpop.f32.mrf.mxu0
  %v1646 = vadd.f32 %v1605, %v1645
  %v1647 = vpop.f32.mrf.mxu0
  %1648 = vdwg.mxu0
  %v1649 = vmax.f32 %v1559, 0.0
  %v1650 = vmax.f32 %v1561, 0.0
  %v1651 = vmax.f32 %v1643, 0.0
  %v1652 = vmax.f32 %v1563, 0.0
  %v1653 = vmax.f32 %v1565, 0.0
  %v1654 = vmax.f32 %v1646, 0.0
  %v1655 = vpack.c.bf16 %v1652, %v1649
  %v1656 = vpack.c.bf16 %v1653, %v1650
  %v1657 = vpack.c.bf16 %v1654, %v1651
  %v1658 = vld [vmem:[%s3] sm:$0xf]
  %v1659 = vld [vmem:[%s3 + $0x4] sm:$0xf]
  %v1660 = vld [vmem:[%s3 + $0x8] sm:$0xf]
  %v1661 = vld [vmem:[%s3 + $0xc] sm:$0xf]
  %v1662 = vld [vmem:[%s3 + $0x10] sm:$0xf]
  %v1663 = vld [vmem:[%s3 + $0x14] sm:$0xf]
  %v1664 = vld [vmem:[%s3 + $0x18] sm:$0xf]
  %v1665 = vld [vmem:[%s3 + $0x1c] sm:$0xf]
  %v1666 = vld [vmem:[%s3 + $0x20] sm:$0xf]
  %v1667 = vld [vmem:[%s3 + $0x24] sm:$0xf]
  %v1668 = vld [vmem:[%s3 + $0x28] sm:$0xf]
  %v1669 = vld [vmem:[%s3 + $0x2c] sm:$0xf]
  %v1670 = vld [vmem:[%s3 + $0x30] sm:$0xf]
  %v1671 = vld [vmem:[%s3 + $0x34] sm:$0xf]
  %v1672 = vld [vmem:[%s3 + $0x38] sm:$0xf]
  %v1673 = vld [vmem:[%s3 + $0x3c] sm:$0xf]
  %v1674 = vld [vmem:[%s3 + $0x40] sm:$0xf]
  %v1675 = vld [vmem:[%s3 + $0x44] sm:$0xf]
  %v1676 = vld [vmem:[%s3 + $0x48] sm:$0xf]
  %v1677 = vld [vmem:[%s3 + $0x4c] sm:$0xf]
  %v1678 = vld [vmem:[%s3 + $0x50] sm:$0xf]
  %v1679 = vld [vmem:[%s3 + $0x54] sm:$0xf]
  %v1680 = vld [vmem:[%s3 + $0x58] sm:$0xf]
  %v1681 = vld [vmem:[%s3 + $0x5c] sm:$0xf]
  %v1682 = vld [vmem:[%s3 + $0x60] sm:$0xf]
  %v1683 = vld [vmem:[%s3 + $0x64] sm:$0xf]
  %v1684 = vld [vmem:[%s3 + $0x68] sm:$0xf]
  %v1685 = vld [vmem:[%s3 + $0x6c] sm:$0xf]
  %v1686 = vld [vmem:[%s3 + $0x70] sm:$0xf]
  %v1687 = vld [vmem:[%s3 + $0x74] sm:$0xf]
  %v1688 = vld [vmem:[%s3 + $0x78] sm:$0xf]
  %v1689 = vld [vmem:[%s3 + $0x7c] sm:$0xf]
  %v1690 = vld [vmem:[%s3 + $0x80] sm:$0xf]
  %v1691 = vld [vmem:[%s3 + $0x84] sm:$0xf]
  %v1692 = vld [vmem:[%s3 + $0x88] sm:$0xf]
  %v1693 = vld [vmem:[%s3 + $0x8c] sm:$0xf]
  %v1694 = vld [vmem:[%s3 + $0x90] sm:$0xf]
  %v1695 = vld [vmem:[%s3 + $0x94] sm:$0xf]
  %v1696 = vld [vmem:[%s3 + $0x98] sm:$0xf]
  %v1697 = vld [vmem:[%s3 + $0x9c] sm:$0xf]
  %v1698 = vld [vmem:[%s3 + $0xa0] sm:$0xf]
  %v1699 = vld [vmem:[%s3 + $0xa4] sm:$0xf]
  %v1700 = vld [vmem:[%s3 + $0xa8] sm:$0xf]
  %v1701 = vld [vmem:[%s3 + $0xac] sm:$0xf]
  %v1702 = vld [vmem:[%s3 + $0xb0] sm:$0xf]
  %v1703 = vld [vmem:[%s3 + $0xb4] sm:$0xf]
  %v1704 = vld [vmem:[%s3 + $0xb8] sm:$0xf]
  %v1705 = vld [vmem:[%s3 + $0xbc] sm:$0xf]
  %v1707 = vlaneseq
  %v1708 = vshrl.u32 %v1707, 7
  %v1709 = vsub.s32 0, %v1708
  %v1710 = vrot.slane %v41, %v1709
  %v1760 = vunpack.c.l.b16 %v1658
  %v1761 = vunpack.c.l.b16 %v1659
  %v1762 = vunpack.c.l.b16 %v1660
  %v1763 = vunpack.c.l.b16 %v1661
  %v1764 = vunpack.c.l.b16 %v1662
  %v1765 = vunpack.c.l.b16 %v1663
  %v1766 = vunpack.c.l.b16 %v1664
  %v1767 = vunpack.c.l.b16 %v1665
  %v1768 = vunpack.c.l.b16 %v1666
  %v1769 = vunpack.c.l.b16 %v1667
  %v1770 = vunpack.c.l.b16 %v1668
  %v1771 = vunpack.c.l.b16 %v1669
  %v1772 = vunpack.c.l.b16 %v1670
  %v1773 = vunpack.c.l.b16 %v1671
  %v1774 = vunpack.c.l.b16 %v1672
  %v1775 = vunpack.c.l.b16 %v1673
  %v1776 = vunpack.c.l.b16 %v1674
  %v1777 = vunpack.c.l.b16 %v1675
  %v1778 = vunpack.c.l.b16 %v1676
  %v1779 = vunpack.c.l.b16 %v1677
  %v1780 = vunpack.c.l.b16 %v1678
  %v1781 = vunpack.c.l.b16 %v1679
  %v1782 = vunpack.c.l.b16 %v1680
  %v1783 = vunpack.c.l.b16 %v1681
  %v1784 = vunpack.c.l.b16 %v1682
  %v1785 = vunpack.c.l.b16 %v1683
  %v1786 = vunpack.c.l.b16 %v1684
  %v1787 = vunpack.c.l.b16 %v1685
  %v1788 = vunpack.c.l.b16 %v1686
  %v1789 = vunpack.c.l.b16 %v1687
  %v1790 = vunpack.c.l.b16 %v1688
  %v1791 = vunpack.c.l.b16 %v1689
  %v1792 = vunpack.c.l.b16 %v1690
  %v1793 = vunpack.c.l.b16 %v1691
  %v1794 = vunpack.c.l.b16 %v1692
  %v1795 = vunpack.c.l.b16 %v1693
  %v1796 = vunpack.c.l.b16 %v1694
  %v1797 = vunpack.c.l.b16 %v1695
  %v1798 = vunpack.c.l.b16 %v1696
  %v1799 = vunpack.c.l.b16 %v1697
  %v1800 = vunpack.c.l.b16 %v1698
  %v1801 = vunpack.c.l.b16 %v1699
  %v1802 = vunpack.c.l.b16 %v1700
  %v1803 = vunpack.c.l.b16 %v1701
  %v1804 = vunpack.c.l.b16 %v1702
  %v1805 = vunpack.c.l.b16 %v1703
  %v1806 = vunpack.c.l.b16 %v1704
  %v1807 = vunpack.c.l.b16 %v1705
  %v1808 = vpack.c.b16 %v1761, %v1760
  %v1809 = vpack.c.b16 %v1763, %v1762
  %v1810 = vpack.c.b16 %v1765, %v1764
  %v1811 = vpack.c.b16 %v1767, %v1766
  %v1812 = vpack.c.b16 %v1769, %v1768
  %v1813 = vpack.c.b16 %v1771, %v1770
  %v1814 = vpack.c.b16 %v1773, %v1772
  %v1815 = vpack.c.b16 %v1775, %v1774
  %v1816 = vpack.c.b16 %v1777, %v1776
  %v1817 = vpack.c.b16 %v1779, %v1778
  %v1818 = vpack.c.b16 %v1781, %v1780
  %v1819 = vpack.c.b16 %v1783, %v1782
  %v1820 = vpack.c.b16 %v1785, %v1784
  %v1821 = vpack.c.b16 %v1787, %v1786
  %v1822 = vpack.c.b16 %v1789, %v1788
  %v1823 = vpack.c.b16 %v1791, %v1790
  %v1824 = vpack.c.b16 %v1793, %v1792
  %v1825 = vpack.c.b16 %v1795, %v1794
  %v1826 = vpack.c.b16 %v1797, %v1796
  %v1827 = vpack.c.b16 %v1799, %v1798
  %v1828 = vpack.c.b16 %v1801, %v1800
  %v1829 = vpack.c.b16 %v1803, %v1802
  %v1830 = vpack.c.b16 %v1805, %v1804
  %v1831 = vpack.c.b16 %v1807, %v1806
  %1856 = vmatprep.subr.bf16.mxu0 0
  %1857 = vmatpush1.bf16.msra.mxu0 %v1815
  %1858 = vmatprep.subr.bf16.mxu0 0
  %1859 = vmatpush1.bf16.msra.mxu0 %v1814
  %1860 = vmatprep.subr.bf16.mxu0 0
  %1861 = vmatpush1.bf16.msra.mxu0 %v1813
  %1862 = vmatprep.subr.bf16.mxu0 0
  %1863 = vmatpush1.bf16.msra.mxu0 %v1812
  %1864 = vmatprep.subr.bf16.mxu0 0
  %1865 = vmatpush1.bf16.msra.mxu0 %v1811
  %1866 = vmatprep.subr.bf16.mxu0 0
  %1867 = vmatpush1.bf16.msra.mxu0 %v1810
  %1868 = vmatprep.subr.bf16.mxu0 0
  %1869 = vmatpush1.bf16.msra.mxu0 %v1809
  %1870 = vmatprep.subr.bf16.mxu0 0
  %1871 = vmatpush1.bf16.msra.mxu0 %v1808
  %1872 = vmatprep.subr.bf16.mxu0 0
  %1873 = vmatpush2.bf16.msra.mxu0 %v1823
  %1874 = vmatprep.subr.bf16.mxu0 0
  %1875 = vmatpush2.bf16.msra.mxu0 %v1822
  %1876 = vmatprep.subr.bf16.mxu0 0
  %1877 = vmatpush2.bf16.msra.mxu0 %v1821
  %1878 = vmatprep.subr.bf16.mxu0 0
  %1879 = vmatpush2.bf16.msra.mxu0 %v1820
  %1880 = vmatprep.subr.bf16.mxu0 0
  %1881 = vmatpush2.bf16.msra.mxu0 %v1819
  %1882 = vmatprep.subr.bf16.mxu0 0
  %1883 = vmatpush2.bf16.msra.mxu0 %v1818
  %1884 = vmatprep.subr.bf16.mxu0 0
  %1885 = vmatpush2.bf16.msra.mxu0 %v1817
  %1886 = vmatprep.subr.bf16.mxu0 0
  %1887 = vmatpush2.bf16.msra.mxu0 %v1816
  %1888 = vmatprep.mubr.bf16.mxu0 %v1656
  %1889 = vmatmul.mubr.bf16.gmra.mxu0 %v1655
  %v1890 = vpop.f32.mrf.mxu0
  %v1891 = vadd.f32 %v1710, %v1890
  %v1892 = vpop.f32.mrf.mxu0
  %v1893 = vpop.f32.mrf.mxu0
  %v1894 = vadd.f32 %v1710, %v1893
  %v1895 = vpop.f32.mrf.mxu0
  %1896 = vdwg.mxu0
  %1897 = vmatprep.subr.bf16.mxu0 0
  %1898 = vmatpush1.bf16.msra.mxu0 %v1831
  %1899 = vmatprep.subr.bf16.mxu0 0
  %1900 = vmatpush1.bf16.msra.mxu0 %v1830
  %1901 = vmatprep.subr.bf16.mxu0 0
  %1902 = vmatpush1.bf16.msra.mxu0 %v1829
  %1903 = vmatprep.subr.bf16.mxu0 0
  %1904 = vmatpush1.bf16.msra.mxu0 %v1828
  %1905 = vmatprep.subr.bf16.mxu0 0
  %1906 = vmatpush1.bf16.msra.mxu0 %v1827
  %1907 = vmatprep.subr.bf16.mxu0 0
  %1908 = vmatpush1.bf16.msra.mxu0 %v1826
  %1909 = vmatprep.subr.bf16.mxu0 0
  %1910 = vmatpush1.bf16.msra.mxu0 %v1825
  %1911 = vmatprep.subr.bf16.mxu0 0
  %1912 = vmatpush1.bf16.msra.mxu0 %v1824
  %1913 = vmatprep.subr.bf16.mxu0 0
  %1914 = vmatpush2.bf16.msra.mxu0 0
  %1915 = vmatprep.subr.bf16.mxu0 0
  %1916 = vmatpush2.bf16.msra.mxu0 0
  %1917 = vmatprep.subr.bf16.mxu0 0
  %1918 = vmatpush2.bf16.msra.mxu0 0
  %1919 = vmatprep.subr.bf16.mxu0 0
  %1920 = vmatpush2.bf16.msra.mxu0 0
  %1921 = vmatprep.subr.bf16.mxu0 0
  %1922 = vmatpush2.bf16.msra.mxu0 0
  %1923 = vmatprep.subr.bf16.mxu0 0
  %1924 = vmatpush2.bf16.msra.mxu0 0
  %1925 = vmatprep.subr.bf16.mxu0 0
  %1926 = vmatpush2.bf16.msra.mxu0 0
  %1927 = vmatprep.subr.bf16.mxu0 0
  %1928 = vmatpush2.bf16.msra.mxu0 0
  %1929 = vmatprep.mubr.bf16.mxu0 0
  %1930 = vmatmul.mubr.bf16.gmra.mxu0 %v1657
  %v1931 = vpop.f32.mrf.mxu0
  %v1932 = vadd.f32 %v1891, %v1931
  %v1933 = vpop.f32.mrf.mxu0
  %v1934 = vpop.f32.mrf.mxu0
  %v1935 = vadd.f32 %v1894, %v1934
  %v1936 = vpop.f32.mrf.mxu0
  %1937 = vdwg.mxu0
  %v1938 = vpack.c.bf16 %v1935, %v1932
  %v1939 = vld [vmem:[%s5] sm:$0xf]
  %v1940 = vld [vmem:[%s5 + $0x4] sm:$0xf]
  %v1941 = vld [vmem:[%s5 + $0x8] sm:$0xf]
  %v1942 = vld [vmem:[%s5 + $0xc] sm:$0xf]
  %v1943 = vld [vmem:[%s5 + $0x10] sm:$0xf]
  %v1944 = vld [vmem:[%s5 + $0x14] sm:$0xf]
  %v1945 = vld [vmem:[%s5 + $0x18] sm:$0xf]
  %v1946 = vld [vmem:[%s5 + $0x1c] sm:$0xf]
  %v1947 = vld [vmem:[%s5 + $0x20] sm:$0xf]
  %v1948 = vld [vmem:[%s5 + $0x24] sm:$0xf]
  %v1949 = vld [vmem:[%s5 + $0x28] sm:$0xf]
  %v1950 = vld [vmem:[%s5 + $0x2c] sm:$0xf]
  %v1951 = vld [vmem:[%s5 + $0x30] sm:$0xf]
  %v1952 = vld [vmem:[%s5 + $0x34] sm:$0xf]
  %v1953 = vld [vmem:[%s5 + $0x38] sm:$0xf]
  %v1954 = vld [vmem:[%s5 + $0x3c] sm:$0xf]
  %v1971 = vunpack.c.l.b16 %v1939
  %v1972 = vunpack.c.l.b16 %v1940
  %v1973 = vunpack.c.l.b16 %v1941
  %v1974 = vunpack.c.l.b16 %v1942
  %v1975 = vunpack.c.l.b16 %v1943
  %v1976 = vunpack.c.l.b16 %v1944
  %v1977 = vunpack.c.l.b16 %v1945
  %v1978 = vunpack.c.l.b16 %v1946
  %v1979 = vunpack.c.l.b16 %v1947
  %v1980 = vunpack.c.l.b16 %v1948
  %v1981 = vunpack.c.l.b16 %v1949
  %v1982 = vunpack.c.l.b16 %v1950
  %v1983 = vunpack.c.l.b16 %v1951
  %v1984 = vunpack.c.l.b16 %v1952
  %v1985 = vunpack.c.l.b16 %v1953
  %v1986 = vunpack.c.l.b16 %v1954
  %v1987 = vpack.c.b16 %v1972, %v1971
  %v1988 = vpack.c.b16 %v1974, %v1973
  %v1989 = vpack.c.b16 %v1976, %v1975
  %v1990 = vpack.c.b16 %v1978, %v1977
  %v1991 = vpack.c.b16 %v1980, %v1979
  %v1992 = vpack.c.b16 %v1982, %v1981
  %v1993 = vpack.c.b16 %v1984, %v1983
  %v1994 = vpack.c.b16 %v1986, %v1985
  %2003 = vmatprep.subr.bf16.mxu0 0
  %2004 = vmatpush1.bf16.msra.mxu0 %v1994
  %2005 = vmatprep.subr.bf16.mxu0 0
  %2006 = vmatpush1.bf16.msra.mxu0 %v1993
  %2007 = vmatprep.subr.bf16.mxu0 0
  %2008 = vmatpush1.bf16.msra.mxu0 %v1992
  %2009 = vmatprep.subr.bf16.mxu0 0
  %2010 = vmatpush1.bf16.msra.mxu0 %v1991
  %2011 = vmatprep.subr.bf16.mxu0 0
  %2012 = vmatpush1.bf16.msra.mxu0 %v1990
  %2013 = vmatprep.subr.bf16.mxu0 0
  %2014 = vmatpush1.bf16.msra.mxu0 %v1989
  %2015 = vmatprep.subr.bf16.mxu0 0
  %2016 = vmatpush1.bf16.msra.mxu0 %v1988
  %2017 = vmatprep.subr.bf16.mxu0 0
  %2018 = vmatpush1.bf16.msra.mxu0 %v1987
  %2019 = vmatprep.subr.bf16.mxu0 0
  %2020 = vmatpush2.bf16.msra.mxu0 0
  %2021 = vmatprep.subr.bf16.mxu0 0
  %2022 = vmatpush2.bf16.msra.mxu0 0
  %2023 = vmatprep.subr.bf16.mxu0 0
  %2024 = vmatpush2.bf16.msra.mxu0 0
  %2025 = vmatprep.subr.bf16.mxu0 0
  %2026 = vmatpush2.bf16.msra.mxu0 0
  %2027 = vmatprep.subr.bf16.mxu0 0
  %2028 = vmatpush2.bf16.msra.mxu0 0
  %2029 = vmatprep.subr.bf16.mxu0 0
  %2030 = vmatpush2.bf16.msra.mxu0 0
  %2031 = vmatprep.subr.bf16.mxu0 0
  %2032 = vmatpush2.bf16.msra.mxu0 0
  %2033 = vmatprep.subr.bf16.mxu0 0
  %2034 = vmatpush2.bf16.msra.mxu0 0
  %2035 = vmatprep.mubr.bf16.mxu0 0
  %2036 = vmatmul.mubr.bf16.gmra.mxu0 %v1938
  %v2037 = vpop.f32.mrf.mxu0
  %v2038 = vadd.f32 0.0, %v2037
  %v2039 = vpop.f32.mrf.mxu0
  %v2040 = vpop.f32.mrf.mxu0
  %v2041 = vadd.f32 0.0, %v2040
  %v2042 = vpop.f32.mrf.mxu0
  %2043 = vdwg.mxu0
  %v2044 = vld [vmem:[%s4] sm:$0xf]
  %v2045 = vld [vmem:[%s4 + $0x4] sm:$0xf]
  %v2046 = vld [vmem:[%s4 + $0x8] sm:$0xf]
  %v2047 = vld [vmem:[%s4 + $0xc] sm:$0xf]
  %v2048 = vld [vmem:[%s4 + $0x10] sm:$0xf]
  %v2049 = vld [vmem:[%s4 + $0x14] sm:$0xf]
  %v2050 = vld [vmem:[%s4 + $0x18] sm:$0xf]
  %v2051 = vld [vmem:[%s4 + $0x1c] sm:$0xf]
  %v2052 = vld [vmem:[%s4 + $0x20] sm:$0xf]
  %v2053 = vld [vmem:[%s4 + $0x24] sm:$0xf]
  %v2054 = vld [vmem:[%s4 + $0x28] sm:$0xf]
  %v2055 = vld [vmem:[%s4 + $0x2c] sm:$0xf]
  %v2056 = vld [vmem:[%s4 + $0x30] sm:$0xf]
  %v2057 = vld [vmem:[%s4 + $0x34] sm:$0xf]
  %v2058 = vld [vmem:[%s4 + $0x38] sm:$0xf]
  %v2059 = vld [vmem:[%s4 + $0x3c] sm:$0xf]
  %v2076 = vunpack.c.l.b16 %v2044
  %v2077 = vunpack.c.l.b16 %v2045
  %v2078 = vunpack.c.l.b16 %v2046
  %v2079 = vunpack.c.l.b16 %v2047
  %v2080 = vunpack.c.l.b16 %v2048
  %v2081 = vunpack.c.l.b16 %v2049
  %v2082 = vunpack.c.l.b16 %v2050
  %v2083 = vunpack.c.l.b16 %v2051
  %v2084 = vunpack.c.l.b16 %v2052
  %v2085 = vunpack.c.l.b16 %v2053
  %v2086 = vunpack.c.l.b16 %v2054
  %v2087 = vunpack.c.l.b16 %v2055
  %v2088 = vunpack.c.l.b16 %v2056
  %v2089 = vunpack.c.l.b16 %v2057
  %v2090 = vunpack.c.l.b16 %v2058
  %v2091 = vunpack.c.l.b16 %v2059
  %v2092 = vpack.c.b16 %v2077, %v2076
  %v2093 = vpack.c.b16 %v2079, %v2078
  %v2094 = vpack.c.b16 %v2081, %v2080
  %v2095 = vpack.c.b16 %v2083, %v2082
  %v2096 = vpack.c.b16 %v2085, %v2084
  %v2097 = vpack.c.b16 %v2087, %v2086
  %v2098 = vpack.c.b16 %v2089, %v2088
  %v2099 = vpack.c.b16 %v2091, %v2090
  %2108 = vmatprep.subr.bf16.mxu0 0
  %2109 = vmatpush1.bf16.msra.mxu0 %v2099
  %2110 = vmatprep.subr.bf16.mxu0 0
  %2111 = vmatpush1.bf16.msra.mxu0 %v2098
  %2112 = vmatprep.subr.bf16.mxu0 0
  %2113 = vmatpush1.bf16.msra.mxu0 %v2097
  %2114 = vmatprep.subr.bf16.mxu0 0
  %2115 = vmatpush1.bf16.msra.mxu0 %v2096
  %2116 = vmatprep.subr.bf16.mxu0 0
  %2117 = vmatpush1.bf16.msra.mxu0 %v2095
  %2118 = vmatprep.subr.bf16.mxu0 0
  %2119 = vmatpush1.bf16.msra.mxu0 %v2094
  %2120 = vmatprep.subr.bf16.mxu0 0
  %2121 = vmatpush1.bf16.msra.mxu0 %v2093
  %2122 = vmatprep.subr.bf16.mxu0 0
  %2123 = vmatpush1.bf16.msra.mxu0 %v2092
  %2124 = vmatprep.subr.bf16.mxu0 0
  %2125 = vmatpush2.bf16.msra.mxu0 0
  %2126 = vmatprep.subr.bf16.mxu0 0
  %2127 = vmatpush2.bf16.msra.mxu0 0
  %2128 = vmatprep.subr.bf16.mxu0 0
  %2129 = vmatpush2.bf16.msra.mxu0 0
  %2130 = vmatprep.subr.bf16.mxu0 0
  %2131 = vmatpush2.bf16.msra.mxu0 0
  %2132 = vmatprep.subr.bf16.mxu0 0
  %2133 = vmatpush2.bf16.msra.mxu0 0
  %2134 = vmatprep.subr.bf16.mxu0 0
  %2135 = vmatpush2.bf16.msra.mxu0 0
  %2136 = vmatprep.subr.bf16.mxu0 0
  %2137 = vmatpush2.bf16.msra.mxu0 0
  %2138 = vmatprep.subr.bf16.mxu0 0
  %2139 = vmatpush2.bf16.msra.mxu0 0
  %2140 = vmatprep.mubr.bf16.mxu0 0
  %2141 = vmatmul.mubr.bf16.gmra.mxu0 %v145
  %v2142 = vpop.f32.mrf.mxu0
  %v2143 = vadd.f32 0.0, %v2142
  %v2144 = vpop.f32.mrf.mxu0
  %v2145 = vpop.f32.mrf.mxu0
  %v2146 = vadd.f32 0.0, %v2145
  %v2147 = vpop.f32.mrf.mxu0
  %2148 = vmatprep.mubr.bf16.mxu0 0
  %2149 = vmatmul.mubr.bf16.gmra.mxu0 %v146
  %v2150 = vpop.f32.mrf.mxu0
  %v2151 = vadd.f32 0.0, %v2150
  %v2152 = vpop.f32.mrf.mxu0
  %v2153 = vpop.f32.mrf.mxu0
  %v2154 = vadd.f32 0.0, %v2153
  %v2155 = vpop.f32.mrf.mxu0
  %2156 = vmatprep.mubr.bf16.mxu0 0
  %2157 = vmatmul.mubr.bf16.gmra.mxu0 %v147
  %v2158 = vpop.f32.mrf.mxu0
  %v2159 = vadd.f32 0.0, %v2158
  %v2160 = vpop.f32.mrf.mxu0
  %v2161 = vpop.f32.mrf.mxu0
  %v2162 = vadd.f32 0.0, %v2161
  %v2163 = vpop.f32.mrf.mxu0
  %2164 = vmatprep.mubr.bf16.mxu0 0
  %2165 = vmatmul.mubr.bf16.gmra.mxu0 %v148
  %v2166 = vpop.f32.mrf.mxu0
  %v2167 = vadd.f32 0.0, %v2166
  %v2168 = vpop.f32.mrf.mxu0
  %v2169 = vpop.f32.mrf.mxu0
  %v2170 = vadd.f32 0.0, %v2169
  %v2171 = vpop.f32.mrf.mxu0
  %2172 = vmatprep.mubr.bf16.mxu0 0
  %2173 = vmatmul.mubr.bf16.gmra.mxu0 %v149
  %v2174 = vpop.f32.mrf.mxu0
  %v2175 = vadd.f32 0.0, %v2174
  %v2176 = vpop.f32.mrf.mxu0
  %v2177 = vpop.f32.mrf.mxu0
  %v2178 = vadd.f32 0.0, %v2177
  %v2179 = vpop.f32.mrf.mxu0
  %2180 = vdwg.mxu0
  %v2181 = vadd.f32 %v2143, %v2038
  %v2182 = vadd.f32 %v2146, %v2041
  %v2183 = vadd.f32 %v2151, %v2038
  %v2184 = vadd.f32 %v2154, %v2041
  %v2185 = vadd.f32 %v2159, %v2038
  %v2186 = vadd.f32 %v2162, %v2041
  %v2187 = vadd.f32 %v2167, %v2038
  %v2188 = vadd.f32 %v2170, %v2041
  %v2189 = vadd.f32 %v2175, %v2038
  %v2190 = vadd.f32 %v2178, %v2041
  %v2192 = vlaneseq
  %v2193 = vshrl.u32 %v2192, 7
  %v2194 = vsub.s32 0, %v2193
  %v2195 = vrot.slane %v42, %v2194
  %v2197 = vadd.f32 %v2181, %v2195
  %v2198 = vadd.f32 %v2182, %v2195
  %v2199 = vadd.f32 %v2183, %v2195
  %v2200 = vadd.f32 %v2184, %v2195
  %v2201 = vadd.f32 %v2185, %v2195
  %v2202 = vadd.f32 %v2186, %v2195
  %v2203 = vadd.f32 %v2187, %v2195
  %v2204 = vadd.f32 %v2188, %v2195
  %v2205 = vadd.f32 %v2189, %v2195
  %v2206 = vadd.f32 %v2190, %v2195
  %v2207 = vmax.f32 %v2197, 0.0
  %v2208 = vmax.f32 %v2198, 0.0
  %v2209 = vmax.f32 %v2199, 0.0
  %v2210 = vmax.f32 %v2200, 0.0
  %v2211 = vmax.f32 %v2201, 0.0
  %v2212 = vmax.f32 %v2202, 0.0
  %v2213 = vmax.f32 %v2203, 0.0
  %v2214 = vmax.f32 %v2204, 0.0
  %v2215 = vmax.f32 %v2205, 0.0
  %v2216 = vmax.f32 %v2206, 0.0
  %v2218 = vlaneseq
  %v2219 = vshrl.u32 %v2218, 7
  %v2220 = vsub.s32 0, %v2219
  %v2221 = vrot.slane %v43, %v2220
  %v2223 = vmul.f32 %v2207, %v2221
  %v2224 = vmul.f32 %v2208, %v2221
  %v2225 = vmul.f32 %v2209, %v2221
  %v2226 = vmul.f32 %v2210, %v2221
  %v2227 = vmul.f32 %v2211, %v2221
  %v2228 = vmul.f32 %v2212, %v2221
  %v2229 = vmul.f32 %v2213, %v2221
  %v2230 = vmul.f32 %v2214, %v2221
  %v2231 = vmul.f32 %v2215, %v2221
  %v2232 = vmul.f32 %v2216, %v2221
  %2233 = vadd.xlane.f32.xlu0 %v2223
  %v2234 = vpop.xlane.xlu0 %2233
  %2235 = vadd.xlane.f32.xlu0 %v2224
  %v2236 = vpop.xlane.xlu0 %2235
  %2237 = vadd.xlane.f32.xlu0 %v2225
  %v2238 = vpop.xlane.xlu0 %2237
  %2239 = vadd.xlane.f32.xlu0 %v2226
  %v2240 = vpop.xlane.xlu0 %2239
  %2241 = vadd.xlane.f32.xlu0 %v2227
  %v2242 = vpop.xlane.xlu0 %2241
  %2243 = vadd.xlane.f32.xlu0 %v2228
  %v2244 = vpop.xlane.xlu0 %2243
  %2245 = vadd.xlane.f32.xlu0 %v2229
  %v2246 = vpop.xlane.xlu0 %2245
  %2247 = vadd.xlane.f32.xlu0 %v2230
  %v2248 = vpop.xlane.xlu0 %2247
  %2249 = vadd.xlane.f32.xlu0 %v2231
  %v2250 = vpop.xlane.xlu0 %2249
  %2251 = vadd.xlane.f32.xlu0 %v2232
  %v2252 = vpop.xlane.xlu0 %2251
  %v2254 = vlaneseq
  %v2255 = vshrl.u32 %v2254, 7
  %v2256 = vsub.s32 0, %v2255
  %v2257 = vrot.slane %v44, %v2256
  %2258 = vset.pattern.permute.xlu0 0
  %2259 = vperm.xlu0 %2258, %v2257
  %v2260 = vpop.permute.xlu0 %2259
  %v2262 = vadd.f32 %v2234, %v2260
  %v2263 = vadd.f32 %v2236, %v2260
  %v2264 = vadd.f32 %v2238, %v2260
  %v2265 = vadd.f32 %v2240, %v2260
  %v2266 = vadd.f32 %v2242, %v2260
  %v2267 = vadd.f32 %v2244, %v2260
  %v2268 = vadd.f32 %v2246, %v2260
  %v2269 = vadd.f32 %v2248, %v2260
  %v2270 = vadd.f32 %v2250, %v2260
  %v2271 = vadd.f32 %v2252, %v2260
  %v2282 = vlaneseq
  %v2283 = vand.u32 %v2282, 127
  %v2284 = vlaneseq
  %v2285 = vshrl.u32 %v2284, 7
  %v2286 = vsub.s32 %v2283, %v2285
  %v2287 = vrot.slane %v2262, %v2286
  %v2288 = vadd.s32 %v2283, 4294967288
  %v2289 = vlaneseq
  %v2290 = vshrl.u32 %v2289, 7
  %v2291 = vsub.s32 %v2288, %v2290
  %v2292 = vrot.slane %v2263, %v2291
  %vm2293 = vcmask 130112
  %v2294 = vsel %vm2293, %v2292, %v2287
  %v2295 = vlaneseq
  %v2296 = vshrl.u32 %v2295, 7
  %v2297 = vsub.s32 %v2283, %v2296
  %v2298 = vrot.slane %v2264, %v2297
  %v2299 = vlaneseq
  %v2300 = vshrl.u32 %v2299, 7
  %v2301 = vsub.s32 %v2288, %v2300
  %v2302 = vrot.slane %v2265, %v2301
  %v2303 = vsel %vm2293, %v2302, %v2298
  %v2304 = vlaneseq
  %v2305 = vshrl.u32 %v2304, 7
  %v2306 = vsub.s32 %v2283, %v2305
  %v2307 = vrot.slane %v2266, %v2306
  %v2308 = vlaneseq
  %v2309 = vshrl.u32 %v2308, 7
  %v2310 = vsub.s32 %v2288, %v2309
  %v2311 = vrot.slane %v2267, %v2310
  %v2312 = vsel %vm2293, %v2311, %v2307
  %v2313 = vlaneseq
  %v2314 = vshrl.u32 %v2313, 7
  %v2315 = vsub.s32 %v2283, %v2314
  %v2316 = vrot.slane %v2268, %v2315
  %v2317 = vlaneseq
  %v2318 = vshrl.u32 %v2317, 7
  %v2319 = vsub.s32 %v2288, %v2318
  %v2320 = vrot.slane %v2269, %v2319
  %v2321 = vsel %vm2293, %v2320, %v2316
  %v2322 = vlaneseq
  %v2323 = vshrl.u32 %v2322, 7
  %v2324 = vsub.s32 %v2283, %v2323
  %v2325 = vrot.slane %v2270, %v2324
  %v2326 = vlaneseq
  %v2327 = vshrl.u32 %v2326, 7
  %v2328 = vsub.s32 %v2288, %v2327
  %v2329 = vrot.slane %v2271, %v2328
  %v2330 = vsel %vm2293, %v2329, %v2325
  %vm2331 = vcmask 1041409
  %v2332 = vsel %vm2331, %v2303, %v2294
  %vm2333 = vcmask 1042434
  %v2334 = vsel %vm2333, %v2312, %v2332
  %vm2335 = vcmask 1043459
  %v2336 = vsel %vm2335, %v2321, %v2334
  %vm2337 = vcmask 1044484
  %v2338 = vsel %vm2337, %v2330, %v2336
  %vm2340 = vcmask 126976
  %2341 = vst.msk [vmem:[%s7] sm:$0x1f] %vm2340, %v2338
  // Predicated region
  $region30: #{order_image_net.1} parent=0 // pred_check
    _
  $region31: #{order_image_net.1} parent=0 // pred_check_branch
    %2343 = sbr.rel (0) target = $region33
  $region32: #{order_image_net.1} parent=0 // pred_region
    _
  $region33: #{order_image_net.1} parent=0 // pred_fallthru
    _
  // Predicated region
  $region34: #{order_image_net.1} parent=0 // pred_check
    _
  $region35: #{order_image_net.1} parent=0 // pred_check_branch
    %2345 = sbr.rel (0) target = $region37
  $region36: #{order_image_net.1} parent=0 // pred_region
    _
  $region37: #{order_image_net.1} parent=0 // pred_fallthru
    _

</llo_original>
